<compile_context>
chip_gen: v7x
topology: tpu7x:2x2x1
jax: 0.10.0
libtpu: 0.0.40
codegen_flags: <defaults>
</compile_context>

<pallas_src>
import functools
import numpy as np

import jax
import jax.numpy as jnp
from jax.experimental import pallas as pl
from jax.experimental.pallas import tpu as pltpu

# ----------------------------- model constants ------------------------------
IN_CH = 5          # image channels (BxNx5xHxW)
CONV_CH = 32       # conv output channels
FEAT_DIM = 64      # per-view feature dim (z)
HIDDEN = 128       # denoiser hidden dim
TARGET_DIM = 6     # denoiser.target_dim -> BxNx6 poses
TEMB_DIM = 16      # sinusoidal time-embedding dim
T_STEPS = 100      # diffusion timesteps

# diffusion schedule (linear betas), kept in numpy for static scalar glue
_BETAS_NP = np.linspace(1e-4, 0.02, T_STEPS, dtype=np.float64)
_ACP_NP = np.cumprod(1.0 - _BETAS_NP).astype(np.float32)
ALPHAS_CUMPROD = jnp.asarray(_ACP_NP)

_VMEM_LIMIT = 32 * 1024 * 1024   # explicit scoped-VMEM limit (safe on v5e..v7x)


def _round_up(x, m):
    return ((x + m - 1) // m) * m


def _pick_hw_tile(hw):
    for c in (2048, 1024, 512, 256, 128, 64, 32, 16, 8):
        if hw % c == 0:
            return c
    return hw


# ------------------------------ Pallas kernels -------------------------------
def _linear_kernel(x_ref, w_ref, b_ref, o_ref, *, relu):
    acc = jnp.dot(x_ref[...], w_ref[...], preferred_element_type=jnp.float32)
    acc = acc + b_ref[...]
    if relu:
        acc = jnp.maximum(acc, 0.0)
    o_ref[...] = acc.astype(o_ref.dtype)


def pallas_linear(x, w, b, relu=False, tm=512):
    """y = relu?(x @ w + b), tiled over rows. x: (M, K), w: (K, N), b: (N,)."""
    M, K = x.shape
    Kw, N = w.shape
    assert K == Kw
    Mp = _round_up(M, 8)
    tm = min(tm, Mp)
    Mp = _round_up(Mp, tm)
    if Mp != M:
        x = jnp.pad(x, ((0, Mp - M), (0, 0)))
    out = pl.pallas_call(
        functools.partial(_linear_kernel, relu=relu),
        out_shape=jax.ShapeDtypeStruct((Mp, N), jnp.float32),
        grid=(Mp // tm,),
        in_specs=[
            pl.BlockSpec((tm, K), lambda i: (i, 0)),
            pl.BlockSpec((K, N), lambda i: (0, 0)),
            pl.BlockSpec((1, N), lambda i: (0, 0)),
        ],
        out_specs=pl.BlockSpec((tm, N), lambda i: (i, 0)),
        compiler_params=pltpu.CompilerParams(
            dimension_semantics=("parallel",),
            vmem_limit_bytes=_VMEM_LIMIT),
    )(x, w, b.reshape(1, N))
    return out[:M]


def _conv_pool_fc_kernel(patch_ref, wc_ref, bc_ref, wf_ref, bf_ref,
                         o_ref, acc_ref, *, inv_hw):
    """Fused conv3x3(as matmul)+bias+ReLU -> sum over pixels -> mean -> fc."""
    t = pl.program_id(1)

    @pl.when(t == 0)
    def _init():
        acc_ref[...] = jnp.zeros_like(acc_ref)

    x = patch_ref[0]                                               # (thw, Kp) bf16
    h = jnp.dot(x, wc_ref[...], preferred_element_type=jnp.float32)  # (thw, Cout)
    h = jnp.maximum(h + bc_ref[...], 0.0)
    acc_ref[...] += jnp.sum(h, axis=0, keepdims=True)              # (1, Cout)

    @pl.when(t == pl.num_programs(1) - 1)
    def _finish():
        pooled = acc_ref[...] * inv_hw                             # (1, Cout) f32
        feat = jnp.dot(pooled, wf_ref[...],
                       preferred_element_type=jnp.float32) + bf_ref[...]
        o_ref[0] = feat.astype(o_ref.dtype)                        # (1, FEAT_DIM)


def _mlp3_kernel(x_ref, w1_ref, b1_ref, w2_ref, b2_ref, w3_ref, b3_ref, o_ref):
    h = jnp.dot(x_ref[...], w1_ref[...], preferred_element_type=jnp.float32)
    h = jnp.maximum(h + b1_ref[...], 0.0)
    h = jnp.maximum(jnp.dot(h, w2_ref[...],
                            preferred_element_type=jnp.float32) + b2_ref[...], 0.0)
    o = jnp.dot(h, w3_ref[...], preferred_element_type=jnp.float32) + b3_ref[...]
    o_ref[...] = o.astype(o_ref.dtype)


def pallas_mlp3(x, p, tm=256):
    """Fused 3-layer denoiser MLP (training path). x: (M, K) -> (M, TARGET_DIM)."""
    M, K = x.shape
    H = p["w1"].shape[1]
    D = p["w3"].shape[1]
    Mp = _round_up(M, 8)
    tm = min(tm, Mp)
    Mp = _round_up(Mp, tm)
    if Mp != M:
        x = jnp.pad(x, ((0, Mp - M), (0, 0)))
    out = pl.pallas_call(
        _mlp3_kernel,
        out_shape=jax.ShapeDtypeStruct((Mp, D), jnp.float32),
        grid=(Mp // tm,),
        in_specs=[
            pl.BlockSpec((tm, K), lambda i: (i, 0)),
            pl.BlockSpec((K, H), lambda i: (0, 0)),
            pl.BlockSpec((1, H), lambda i: (0, 0)),
            pl.BlockSpec((H, H), lambda i: (0, 0)),
            pl.BlockSpec((1, H), lambda i: (0, 0)),
            pl.BlockSpec((H, D), lambda i: (0, 0)),
            pl.BlockSpec((1, D), lambda i: (0, 0)),
        ],
        out_specs=pl.BlockSpec((tm, D), lambda i: (i, 0)),
        compiler_params=pltpu.CompilerParams(
            dimension_semantics=("parallel",),
            vmem_limit_bytes=_VMEM_LIMIT),
    )(x, p["w1"], p["b1"].reshape(1, H), p["w2"], p["b2"].reshape(1, H),
      p["w3"], p["b3"].reshape(1, D))
    return out[:M]


def _ddim_kernel(x_ref, zw1_ref, tw1_ref, w1x_ref, w2_ref, b2_ref,
                 w3_ref, b3_ref, o_ref, *, step_coefs):
    """Entire DDIM loop: weights resident in VMEM, static unrolled schedule."""
    x = x_ref[...]            # (tm, D)  f32
    zw1 = zw1_ref[...]        # (tm, H)  precomputed z @ w1_z + b1
    tw1 = tw1_ref[...]        # (S, H)   precomputed temb @ w1_t
    w1x = w1x_ref[...]
    w2 = w2_ref[...]
    b2 = b2_ref[...]
    w3 = w3_ref[...]
    b3 = b3_ref[...]
    for s, (a_c, b_c) in enumerate(step_coefs):
        h = jnp.dot(x, w1x, preferred_element_type=jnp.float32)
        h = jnp.maximum(h + zw1 + tw1[s:s + 1, :], 0.0)
        h = jnp.maximum(jnp.dot(h, w2, preferred_element_type=jnp.float32) + b2, 0.0)
        x0 = jnp.dot(h, w3, preferred_element_type=jnp.float32) + b3
        x = a_c * x0 + b_c * x                      # eta=0 DDIM update
    o_ref[...] = x.astype(o_ref.dtype)


def pallas_ddim_loop(x, zw1, tw1, w1_x, p, step_coefs, tm=256):
    M, D = x.shape
    S, H = tw1.shape
    Mp = _round_up(M, 8)
    tm = min(tm, Mp)
    Mp = _round_up(Mp, tm)
    if Mp != M:
        x = jnp.pad(x, ((0, Mp - M), (0, 0)))
        zw1 = jnp.pad(zw1, ((0, Mp - M), (0, 0)))
    out = pl.pallas_call(
        functools.partial(_ddim_kernel, step_coefs=tuple(step_coefs)),
        out_shape=jax.ShapeDtypeStruct((Mp, D), jnp.float32),
        grid=(Mp // tm,),
        in_specs=[
            pl.BlockSpec((tm, D), lambda i: (i, 0)),
            pl.BlockSpec((tm, H), lambda i: (i, 0)),
            pl.BlockSpec((S, H), lambda i: (0, 0)),
            pl.BlockSpec((D, H), lambda i: (0, 0)),
            pl.BlockSpec((H, H), lambda i: (0, 0)),
            pl.BlockSpec((1, H), lambda i: (0, 0)),
            pl.BlockSpec((H, D), lambda i: (0, 0)),
            pl.BlockSpec((1, D), lambda i: (0, 0)),
        ],
        out_specs=pl.BlockSpec((tm, D), lambda i: (i, 0)),
        compiler_params=pltpu.CompilerParams(
            dimension_semantics=("parallel",),
            vmem_limit_bytes=_VMEM_LIMIT),
    )(x, zw1, tw1, w1_x, p["w2"], p["b2"].reshape(1, H),
      p["w3"], p["b3"].reshape(1, TARGET_DIM))
    return out[:M]


# ------------------------------- model pieces --------------------------------
def init_params(key):
    ks = jax.random.split(key, 6)
    in_dim = TARGET_DIM + TEMB_DIM + FEAT_DIM
    p = {
        "conv_w": jax.random.normal(ks[0], (CONV_CH, IN_CH, 3, 3), jnp.float32) * 0.1,
        "conv_b": jnp.zeros((CONV_CH,), jnp.float32),
        "fc_w": jax.random.normal(ks[1], (CONV_CH, FEAT_DIM), jnp.float32) * 0.1,
        "fc_b": jnp.zeros((FEAT_DIM,), jnp.float32),
        "w1": jax.random.normal(ks[2], (in_dim, HIDDEN), jnp.float32) / np.sqrt(in_dim),
        "b1": jnp.zeros((HIDDEN,), jnp.float32),
        "w2": jax.random.normal(ks[3], (HIDDEN, HIDDEN), jnp.float32) / np.sqrt(HIDDEN),
        "b2": jnp.zeros((HIDDEN,), jnp.float32),
        "w3": jax.random.normal(ks[4], (HIDDEN, TARGET_DIM), jnp.float32) / np.sqrt(HIDDEN),
        "b3": jnp.zeros((TARGET_DIM,), jnp.float32),
    }
    return p


def _im2col_bf16(images):
    """NCHW image -> (BN, H*W, Kp) bf16 channels-last 3x3 patches, K padded to 8."""
    BN, Cin, H, W = images.shape
    xp = jnp.pad(images, ((0, 0), (0, 0), (1, 1), (1, 1)))
    cols = [xp[:, :, dy:dy + H, dx:dx + W] for dy in range(3) for dx in range(3)]
    patches = jnp.stack(cols, axis=2)                 # (BN, Cin, 9, H, W)
    patches = patches.transpose(0, 3, 4, 1, 2)        # (BN, H, W, Cin, 9)
    patches = patches.reshape(BN, H * W, Cin * 9)
    K = Cin * 9
    Kp = _round_up(K, 8)
    if Kp != K:
        patches = jnp.pad(patches, ((0, 0), (0, 0), (0, Kp - K)))
    return patches.astype(jnp.bfloat16), Kp


def image_feature_extractor(p, images):
    """images: (BN, Cin, H, W) NCHW -> features (BN, FEAT_DIM).

    Single fused Pallas kernel: conv(as matmul)+ReLU+global-avg-pool+fc.
    """
    BN, Cin, H, W = images.shape
    HW = H * W
    patches, Kp = _im2col_bf16(images)                # (BN, HW, Kp) bf16
    thw = _pick_hw_tile(HW)

    wc = p["conv_w"].reshape(CONV_CH, Cin * 9).T      # (Cin*9, Cout)
    wc = jnp.pad(wc, ((0, Kp - Cin * 9), (0, 0))).astype(jnp.bfloat16)

    feat = pl.pallas_call(
        functools.partial(_conv_pool_fc_kernel, inv_hw=1.0 / float(HW)),
        out_shape=jax.ShapeDtypeStruct((BN, 1, FEAT_DIM), jnp.float32),
        grid=(BN, HW // thw),
        in_specs=[
            pl.BlockSpec((1, thw, Kp), lambda b, t: (b, t, 0)),
            pl.BlockSpec((Kp, CONV_CH), lambda b, t: (0, 0)),
            pl.BlockSpec((1, CONV_CH), lambda b, t: (0, 0)),
            pl.BlockSpec((CONV_CH, FEAT_DIM), lambda b, t: (0, 0)),
            pl.BlockSpec((1, FEAT_DIM), lambda b, t: (0, 0)),
        ],
        out_specs=pl.BlockSpec((1, 1, FEAT_DIM), lambda b, t: (b, 0, 0)),
        scratch_shapes=[pltpu.VMEM((1, CONV_CH), jnp.float32)],
        compiler_params=pltpu.CompilerParams(
            dimension_semantics=("parallel", "arbitrary"),
            vmem_limit_bytes=_VMEM_LIMIT),
    )(patches, wc, p["conv_b"].reshape(1, CONV_CH),
      p["fc_w"], p["fc_b"].reshape(1, FEAT_DIM))
    return feat.reshape(BN, FEAT_DIM)


def sinusoidal_embedding(t, dim):
    half = dim // 2
    freqs = jnp.exp(-jnp.log(10000.0) * jnp.arange(half, dtype=jnp.float32) / half)
    args = t.astype(jnp.float32)[:, None] * freqs[None, :]
    return jnp.concatenate([jnp.sin(args), jnp.cos(args)], axis=-1)


def denoiser_apply(p, x_t, t, z):
    """x_t: (B,N,D), t: (B,), z: (B,N,F) -> x_0 prediction (B,N,D)."""
    B, N, D = x_t.shape
    temb = sinusoidal_embedding(t, TEMB_DIM)                   # (B, TEMB_DIM)
    temb = jnp.broadcast_to(temb[:, None, :], (B, N, TEMB_DIM))
    inp = jnp.concatenate([x_t, temb, z], axis=-1).reshape(B * N, -1)
    out = pallas_mlp3(inp, p)
    return out.reshape(B, N, D)


def diffuser_train(p, pose, z, key):
    B, N, D = pose.shape
    kt, kn = jax.random.split(key)
    t = jax.random.randint(kt, (B,), 0, T_STEPS)
    noise = jax.random.normal(kn, pose.shape, pose.dtype)
    sa = jnp.sqrt(ALPHAS_CUMPROD[t])[:, None, None]
    s1a = jnp.sqrt(1.0 - ALPHAS_CUMPROD[t])[:, None, None]
    x_t = sa * pose + s1a * noise
    x0_pred = denoiser_apply(p, x_t, t, z)
    return {"x_0_pred": x0_pred, "x_t": x_t, "t": t, "noise": noise, "z": z}


def ddim_sample(p, z, shape, sampling_timesteps, key):
    """eta=0 DDIM sampling; the whole loop is a single fused Pallas kernel."""
    B, N, D = shape
    M = B * N
    times = np.linspace(-1, T_STEPS - 1, sampling_timesteps + 1)
    times = list(reversed(times.astype(int).tolist()))
    pairs = list(zip(times[:-1], times[1:]))

    # static per-step coefficients: x_next = a * x0_pred + b * x
    t_curs, step_coefs = [], []
    for t_cur, t_next in pairs:
        t_curs.append(t_cur)
        if t_next < 0:
            step_coefs.append((1.0, 0.0))
        else:
            alpha = float(_ACP_NP[t_cur])
            alpha_next = float(_ACP_NP[t_next])
            b_c = float(np.sqrt(1.0 - alpha_next) / np.sqrt(1.0 - alpha))
            a_c = float(np.sqrt(alpha_next) - b_c * np.sqrt(alpha))
            step_coefs.append((a_c, b_c))

    # split layer-1 and hoist the step-invariant pieces out of the loop
    w1 = p["w1"]
    w1_x = w1[:TARGET_DIM]                                  # (D, H)
    w1_t = w1[TARGET_DIM:TARGET_DIM + TEMB_DIM]             # (TEMB, H)
    w1_z = w1[TARGET_DIM + TEMB_DIM:]                       # (FEAT, H)

    z2 = z.reshape(M, FEAT_DIM)
    zw1 = pallas_linear(z2, w1_z, p["b1"])                  # (M, H)  z@w1_z + b1
    temb_tab = sinusoidal_embedding(jnp.asarray(t_curs, jnp.float32), TEMB_DIM)
    tw1 = pallas_linear(temb_tab, w1_t, jnp.zeros((HIDDEN,), jnp.float32))  # (S, H)

    x_init = jax.random.normal(key, (M, D), jnp.float32)
    x = pallas_ddim_loop(x_init, zw1, tw1, w1_x, p, step_coefs)
    return x.reshape(B, N, D), None


@functools.partial(jax.jit, static_argnames=("sampling_timesteps", "training"))
def diffusion_loc_model_bev_forward(params, image, pose=None,
                                    sampling_timesteps=10, training=True,
                                    key=None):
    """image: (B, N, 5, H, W); pose (training): (B, N, TARGET_DIM)."""
    if key is None:
        key = jax.random.PRNGKey(1)
    B, N, C, H, W = image.shape
    reshaped_image = image.reshape(B * N, C, H, W)
    z = image_feature_extractor(params, reshaped_image)        # (B*N, FEAT_DIM)
    z = z.reshape(B, N, -1)

    if training:
        diffusion_results = diffuser_train(params, pose, z, key)
        diffusion_results["pred_pose"] = diffusion_results["x_0_pred"]
        return diffusion_results
    else:
        pred_pose, _ = ddim_sample(params, z, (B, N, TARGET_DIM),
                                   sampling_timesteps, key)
        return {"pred_pose": pred_pose, "z": z}


# ----------------------------------- main ------------------------------------
if __name__ == "__main__":
    key = jax.random.PRNGKey(0)
    k_img, k_pose, k_fwd, k_params = jax.random.split(key, 4)

    B, N, C, H, W = 2, 4, IN_CH, 16, 16
    image = jax.random.normal(k_img, (B, N, C, H, W), jnp.float32)
    pose = jax.random.normal(k_pose, (B, N, TARGET_DIM), jnp.float32)
    params = init_params(k_params)

    # training branch
    out_train = diffusion_loc_model_bev_forward(
        params, image, pose, training=True, key=k_fwd)
    jax.block_until_ready(out_train["pred_pose"])
    assert out_train["pred_pose"].shape == (B, N, TARGET_DIM)
    assert out_train["z"].shape == (B, N, FEAT_DIM)

    # eval branch (DDIM sampling, fused single-kernel loop)
    out_eval = diffusion_loc_model_bev_forward(
        params, image, None, sampling_timesteps=4, training=False, key=k_fwd)
    jax.block_until_ready(out_eval["pred_pose"])
    assert out_eval["pred_pose"].shape == (B, N, TARGET_DIM)

    print("KERNEL_OK")
</pallas_src>

<mosaic_0001>
module attributes {stable_mosaic.version = 11 : i64} {
  func.func @_conv_pool_fc_kernel(%arg0: i32, %arg1: i32, %arg2: memref<1x256x48xbf16, #tpu.memory_space<vmem>>, %arg3: memref<48x32xbf16, #tpu.memory_space<vmem>>, %arg4: memref<1x32xf32, #tpu.memory_space<vmem>>, %arg5: memref<32x64xf32, #tpu.memory_space<vmem>>, %arg6: memref<1x64xf32, #tpu.memory_space<vmem>>, %arg7: memref<1x1x64xf32, #tpu.memory_space<vmem>>, %arg8: memref<1x32xf32, #tpu.memory_space<vmem>>) attributes {dimension_semantics = [#tpu.dimension_semantics<parallel>, #tpu.dimension_semantics<arbitrary>], iteration_bounds = array<i64: 8, 1>, scalar_prefetch = 0 : i64, scratch_operands = 1 : i64, tpu.core_type = #tpu.core_type<tc>, window_params = [{transform_indices = @transform_0, window_bounds = array<i64: 1, 256, 48>}, {pipeline_mode = #tpu.pipeline_mode<synchronous>, transform_indices = @transform_1, window_bounds = array<i64: 48, 32>}, {pipeline_mode = #tpu.pipeline_mode<synchronous>, transform_indices = @transform_2, window_bounds = array<i64: 1, 32>}, {pipeline_mode = #tpu.pipeline_mode<synchronous>, transform_indices = @transform_3, window_bounds = array<i64: 32, 64>}, {pipeline_mode = #tpu.pipeline_mode<synchronous>, transform_indices = @transform_4, window_bounds = array<i64: 1, 64>}, {transform_indices = @transform_5, window_bounds = array<i64: 1, 1, 64>}]} {
    %c0_i32 = arith.constant 0 : i32
    %0 = arith.cmpi eq, %arg1, %c0_i32 : i32
    %1 = arith.extui %0 : i1 to i32
    %c0_i32_0 = arith.constant 0 : i32
    %2 = arith.cmpi ne, %1, %c0_i32_0 : i32
    scf.if %2 {
      %cst_15 = arith.constant 0.000000e+00 : f32
      %20 = vector.broadcast %cst_15 : f32 to vector<1x32xf32>
      %c0_16 = arith.constant 0 : index
      %c0_17 = arith.constant 0 : index
      %21 = vector.load %arg8[%c0_16, %c0_17] : memref<1x32xf32, #tpu.memory_space<vmem>>, vector<1x32xf32>
      tpu.vector_store %arg8[%c0_16, %c0_17], %20 {strides = array<i32>} : memref<1x32xf32, #tpu.memory_space<vmem>>, vector<1x32xf32>,
    } else {
    }
    %c0 = arith.constant 0 : index
    %c0_1 = arith.constant 0 : index
    %c0_2 = arith.constant 0 : index
    %3 = vector.load %arg2[%c0, %c0_1, %c0_2] : memref<1x256x48xbf16, #tpu.memory_space<vmem>>, vector<1x256x48xbf16>
    %4 = vector.shape_cast %3 : vector<1x256x48xbf16> to vector<256x48xbf16>
    %c0_3 = arith.constant 0 : index
    %c0_4 = arith.constant 0 : index
    %5 = vector.load %arg3[%c0_3, %c0_4] : memref<48x32xbf16, #tpu.memory_space<vmem>>, vector<48x32xbf16>
    %cst = arith.constant dense<0.000000e+00> : vector<256x32xf32>
    %6 = tpu.matmul %4, %5, %cst {dimension_numbers = #tpu.dot_dimension_numbers<[1], [0], [0], [1], [0, 0, 1, 1], [], []>} : vector<256x48xbf16>, vector<48x32xbf16>, vector<256x32xf32> -> vector<256x32xf32>
    %c0_5 = arith.constant 0 : index
    %c0_6 = arith.constant 0 : index
    %7 = vector.load %arg4[%c0_5, %c0_6] : memref<1x32xf32, #tpu.memory_space<vmem>>, vector<1x32xf32>
    %8 = vector.broadcast %7 : vector<1x32xf32> to vector<256x32xf32>
    %9 = arith.addf %6, %8 : vector<256x32xf32>
    %cst_7 = arith.constant 0.000000e+00 : f32
    %10 = vector.broadcast %cst_7 : f32 to vector<256x32xf32>
    %11 = arith.maximumf %9, %10 : vector<256x32xf32>
    %c0_8 = arith.constant 0 : index
    %c0_9 = arith.constant 0 : index
    %12 = vector.load %arg8[%c0_8, %c0_9] : memref<1x32xf32, #tpu.memory_space<vmem>>, vector<1x32xf32>
    %cst_10 = arith.constant dense<0.000000e+00> : vector<32xf32>
    %13 = vector.multi_reduction <add>, %11, %cst_10 [0] : vector<256x32xf32> to vector<32xf32>
    %14 = vector.shape_cast %13 : vector<32xf32> to vector<1x32xf32>
    %15 = arith.addf %12, %14 : vector<1x32xf32>
    %c0_11 = arith.constant 0 : index
    %c0_12 = arith.constant 0 : index
    %16 = vector.load %arg8[%c0_11, %c0_12] : memref<1x32xf32, #tpu.memory_space<vmem>>, vector<1x32xf32>
    tpu.vector_store %arg8[%c0_11, %c0_12], %15 {strides = array<i32>} : memref<1x32xf32, #tpu.memory_space<vmem>>, vector<1x32xf32>,
    %c0_i32_13 = arith.constant 0 : i32
    %17 = arith.cmpi eq, %arg1, %c0_i32_13 : i32
    %18 = arith.extui %17 : i1 to i32
    %c0_i32_14 = arith.constant 0 : i32
    %19 = arith.cmpi ne, %18, %c0_i32_14 : i32
    scf.if %19 {
      %c0_15 = arith.constant 0 : index
      %c0_16 = arith.constant 0 : index
      %20 = vector.load %arg8[%c0_15, %c0_16] : memref<1x32xf32, #tpu.memory_space<vmem>>, vector<1x32xf32>
      %cst_17 = arith.constant 3.906250e-03 : f32
      %21 = vector.broadcast %cst_17 : f32 to vector<1x32xf32>
      %22 = arith.mulf %20, %21 : vector<1x32xf32>
      %c0_18 = arith.constant 0 : index
      %c0_19 = arith.constant 0 : index
      %23 = vector.load %arg5[%c0_18, %c0_19] : memref<32x64xf32, #tpu.memory_space<vmem>>, vector<32x64xf32>
      %cst_20 = arith.constant dense<0.000000e+00> : vector<1x64xf32>
      %24 = tpu.matmul %22, %23, %cst_20 {dimension_numbers = #tpu.dot_dimension_numbers<[1], [0], [0], [1], [0, 0, 1, 1], [], []>} : vector<1x32xf32>, vector<32x64xf32>, vector<1x64xf32> -> vector<1x64xf32>
      %c0_21 = arith.constant 0 : index
      %c0_22 = arith.constant 0 : index
      %25 = vector.load %arg6[%c0_21, %c0_22] : memref<1x64xf32, #tpu.memory_space<vmem>>, vector<1x64xf32>
      %26 = arith.addf %24, %25 : vector<1x64xf32>
      %c0_23 = arith.constant 0 : index
      %c0_24 = arith.constant 0 : index
      %c0_25 = arith.constant 0 : index
      %27 = vector.load %arg7[%c0_23, %c0_24, %c0_25] : memref<1x1x64xf32, #tpu.memory_space<vmem>>, vector<1x1x64xf32>
      %28 = vector.shape_cast %27 : vector<1x1x64xf32> to vector<1x64xf32>
      %29 = vector.shape_cast %26 : vector<1x64xf32> to vector<1x1x64xf32>
      tpu.vector_store %arg7[%c0_23, %c0_24, %c0_25], %29 {strides = array<i32>} : memref<1x1x64xf32, #tpu.memory_space<vmem>>, vector<1x1x64xf32>,
    } else {
    }
    return
  }
  func.func @transform_0(%arg0: i32, %arg1: i32) -> (i32, i32, i32) {
    %c0_i32 = arith.constant 0 : i32
    %c0_i32_0 = arith.constant 0 : i32
    return %arg0, %arg1, %c0_i32 : i32, i32, i32
  }
  func.func @transform_1(%arg0: i32, %arg1: i32) -> (i32, i32) {
    %c0_i32 = arith.constant 0 : i32
    %c0_i32_0 = arith.constant 0 : i32
    %c0_i32_1 = arith.constant 0 : i32
    return %c0_i32, %c0_i32_0 : i32, i32
  }
  func.func @transform_2(%arg0: i32, %arg1: i32) -> (i32, i32) {
    %c0_i32 = arith.constant 0 : i32
    %c0_i32_0 = arith.constant 0 : i32
    %c0_i32_1 = arith.constant 0 : i32
    return %c0_i32, %c0_i32_0 : i32, i32
  }
  func.func @transform_3(%arg0: i32, %arg1: i32) -> (i32, i32) {
    %c0_i32 = arith.constant 0 : i32
    %c0_i32_0 = arith.constant 0 : i32
    %c0_i32_1 = arith.constant 0 : i32
    return %c0_i32, %c0_i32_0 : i32, i32
  }
  func.func @transform_4(%arg0: i32, %arg1: i32) -> (i32, i32) {
    %c0_i32 = arith.constant 0 : i32
    %c0_i32_0 = arith.constant 0 : i32
    %c0_i32_1 = arith.constant 0 : i32
    return %c0_i32, %c0_i32_0 : i32, i32
  }
  func.func @transform_5(%arg0: i32, %arg1: i32) -> (i32, i32, i32) {
    %c0_i32 = arith.constant 0 : i32
    %c0_i32_0 = arith.constant 0 : i32
    %c0_i32_1 = arith.constant 0 : i32
    return %arg0, %c0_i32, %c0_i32_0 : i32, i32, i32
  }
}

module attributes {stable_mosaic.version = 11 : i64} {
  func.func @_mlp3_kernel(%arg0: i32, %arg1: memref<8x86xf32, #tpu.memory_space<vmem>>, %arg2: memref<86x128xf32, #tpu.memory_space<vmem>>, %arg3: memref<1x128xf32, #tpu.memory_space<vmem>>, %arg4: memref<128x128xf32, #tpu.memory_space<vmem>>, %arg5: memref<1x128xf32, #tpu.memory_space<vmem>>, %arg6: memref<128x6xf32, #tpu.memory_space<vmem>>, %arg7: memref<1x6xf32, #tpu.memory_space<vmem>>, %arg8: memref<8x6xf32, #tpu.memory_space<vmem>>) attributes {dimension_semantics = [#tpu.dimension_semantics<parallel>], iteration_bounds = array<i64: 1>, scalar_prefetch = 0 : i64, scratch_operands = 0 : i64, tpu.core_type = #tpu.core_type<tc>, window_params = [{transform_indices = @transform_0, window_bounds = array<i64: 8, 86>}, {pipeline_mode = #tpu.pipeline_mode<synchronous>, transform_indices = @transform_1, window_bounds = array<i64: 86, 128>}, {pipeline_mode = #tpu.pipeline_mode<synchronous>, transform_indices = @transform_2, window_bounds = array<i64: 1, 128>}, {pipeline_mode = #tpu.pipeline_mode<synchronous>, transform_indices = @transform_3, window_bounds = array<i64: 128, 128>}, {pipeline_mode = #tpu.pipeline_mode<synchronous>, transform_indices = @transform_4, window_bounds = array<i64: 1, 128>}, {pipeline_mode = #tpu.pipeline_mode<synchronous>, transform_indices = @transform_5, window_bounds = array<i64: 128, 6>}, {pipeline_mode = #tpu.pipeline_mode<synchronous>, transform_indices = @transform_6, window_bounds = array<i64: 1, 6>}, {transform_indices = @transform_7, window_bounds = array<i64: 8, 6>}]} {
    %c0 = arith.constant 0 : index
    %c0_0 = arith.constant 0 : index
    %0 = vector.load %arg1[%c0, %c0_0] : memref<8x86xf32, #tpu.memory_space<vmem>>, vector<8x86xf32>
    %c0_1 = arith.constant 0 : index
    %c0_2 = arith.constant 0 : index
    %1 = vector.load %arg2[%c0_1, %c0_2] : memref<86x128xf32, #tpu.memory_space<vmem>>, vector<86x128xf32>
    %cst = arith.constant dense<0.000000e+00> : vector<8x128xf32>
    %2 = tpu.matmul %0, %1, %cst {dimension_numbers = #tpu.dot_dimension_numbers<[1], [0], [0], [1], [0, 0, 1, 1], [], []>} : vector<8x86xf32>, vector<86x128xf32>, vector<8x128xf32> -> vector<8x128xf32>
    %c0_3 = arith.constant 0 : index
    %c0_4 = arith.constant 0 : index
    %3 = vector.load %arg3[%c0_3, %c0_4] : memref<1x128xf32, #tpu.memory_space<vmem>>, vector<1x128xf32>
    %4 = vector.broadcast %3 : vector<1x128xf32> to vector<8x128xf32>
    %5 = arith.addf %2, %4 : vector<8x128xf32>
    %cst_5 = arith.constant 0.000000e+00 : f32
    %6 = vector.broadcast %cst_5 : f32 to vector<8x128xf32>
    %7 = arith.maximumf %5, %6 : vector<8x128xf32>
    %c0_6 = arith.constant 0 : index
    %c0_7 = arith.constant 0 : index
    %8 = vector.load %arg4[%c0_6, %c0_7] : memref<128x128xf32, #tpu.memory_space<vmem>>, vector<128x128xf32>
    %cst_8 = arith.constant dense<0.000000e+00> : vector<8x128xf32>
    %9 = tpu.matmul %7, %8, %cst_8 {dimension_numbers = #tpu.dot_dimension_numbers<[1], [0], [0], [1], [0, 0, 1, 1], [], []>} : vector<8x128xf32>, vector<128x128xf32>, vector<8x128xf32> -> vector<8x128xf32>
    %c0_9 = arith.constant 0 : index
    %c0_10 = arith.constant 0 : index
    %10 = vector.load %arg5[%c0_9, %c0_10] : memref<1x128xf32, #tpu.memory_space<vmem>>, vector<1x128xf32>
    %11 = vector.broadcast %10 : vector<1x128xf32> to vector<8x128xf32>
    %12 = arith.addf %9, %11 : vector<8x128xf32>
    %cst_11 = arith.constant 0.000000e+00 : f32
    %13 = vector.broadcast %cst_11 : f32 to vector<8x128xf32>
    %14 = arith.maximumf %12, %13 : vector<8x128xf32>
    %c0_12 = arith.constant 0 : index
    %c0_13 = arith.constant 0 : index
    %15 = vector.load %arg6[%c0_12, %c0_13] : memref<128x6xf32, #tpu.memory_space<vmem>>, vector<128x6xf32>
    %cst_14 = arith.constant dense<0.000000e+00> : vector<8x6xf32>
    %16 = tpu.matmul %14, %15, %cst_14 {dimension_numbers = #tpu.dot_dimension_numbers<[1], [0], [0], [1], [0, 0, 1, 1], [], []>} : vector<8x128xf32>, vector<128x6xf32>, vector<8x6xf32> -> vector<8x6xf32>
    %c0_15 = arith.constant 0 : index
    %c0_16 = arith.constant 0 : index
    %17 = vector.load %arg7[%c0_15, %c0_16] : memref<1x6xf32, #tpu.memory_space<vmem>>, vector<1x6xf32>
    %18 = vector.broadcast %17 : vector<1x6xf32> to vector<8x6xf32>
    %19 = arith.addf %16, %18 : vector<8x6xf32>
    %c0_17 = arith.constant 0 : index
    %c0_18 = arith.constant 0 : index
    %20 = vector.load %arg8[%c0_17, %c0_18] : memref<8x6xf32, #tpu.memory_space<vmem>>, vector<8x6xf32>
    tpu.vector_store %arg8[%c0_17, %c0_18], %19 {strides = array<i32>} : memref<8x6xf32, #tpu.memory_space<vmem>>, vector<8x6xf32>,
    return
  }
  func.func @transform_0(%arg0: i32) -> (i32, i32) {
    %c0_i32 = arith.constant 0 : i32
    %c0_i32_0 = arith.constant 0 : i32
    return %arg0, %c0_i32 : i32, i32
  }
  func.func @transform_1(%arg0: i32) -> (i32, i32) {
    %c0_i32 = arith.constant 0 : i32
    %c0_i32_0 = arith.constant 0 : i32
    %c0_i32_1 = arith.constant 0 : i32
    return %c0_i32, %c0_i32_0 : i32, i32
  }
  func.func @transform_2(%arg0: i32) -> (i32, i32) {
    %c0_i32 = arith.constant 0 : i32
    %c0_i32_0 = arith.constant 0 : i32
    %c0_i32_1 = arith.constant 0 : i32
    return %c0_i32, %c0_i32_0 : i32, i32
  }
  func.func @transform_3(%arg0: i32) -> (i32, i32) {
    %c0_i32 = arith.constant 0 : i32
    %c0_i32_0 = arith.constant 0 : i32
    %c0_i32_1 = arith.constant 0 : i32
    return %c0_i32, %c0_i32_0 : i32, i32
  }
  func.func @transform_4(%arg0: i32) -> (i32, i32) {
    %c0_i32 = arith.constant 0 : i32
    %c0_i32_0 = arith.constant 0 : i32
    %c0_i32_1 = arith.constant 0 : i32
    return %c0_i32, %c0_i32_0 : i32, i32
  }
  func.func @transform_5(%arg0: i32) -> (i32, i32) {
    %c0_i32 = arith.constant 0 : i32
    %c0_i32_0 = arith.constant 0 : i32
    %c0_i32_1 = arith.constant 0 : i32
    return %c0_i32, %c0_i32_0 : i32, i32
  }
  func.func @transform_6(%arg0: i32) -> (i32, i32) {
    %c0_i32 = arith.constant 0 : i32
    %c0_i32_0 = arith.constant 0 : i32
    %c0_i32_1 = arith.constant 0 : i32
    return %c0_i32, %c0_i32_0 : i32, i32
  }
  func.func @transform_7(%arg0: i32) -> (i32, i32) {
    %c0_i32 = arith.constant 0 : i32
    %c0_i32_0 = arith.constant 0 : i32
    return %arg0, %c0_i32 : i32, i32
  }
}

</mosaic_0001>

<llo_original>
// kernel: diffusion_loc_model_bev_forward.3
$region0: #{diffusion_loc_model_bev_forward.3}
  #allocation0 [shape = 'u32[]', space=smem, size = 0x4, offset = 0x4, fixed_abs, tag = 'smem constant byte address 0x4 - core index']
  #allocation1 [shape = 'u32[144,128]{1,0:T(1,128)}', space=vmem, size = 0x12000, scoped, tag = 'internal scratch']
  %s0 = inlined_call_operand.vmem [shape: f32[8,86], index: 0, kind: input, shape index: {}]
  %s1 = inlined_call_operand.vmem [shape: f32[86,128], index: 1, kind: input, shape index: {}]
  %s2 = inlined_call_operand.vmem [shape: f32[1,128], index: 2, kind: input, shape index: {}]
  %s3 = inlined_call_operand.vmem [shape: f32[128,128], index: 3, kind: input, shape index: {}]
  %s4 = inlined_call_operand.vmem [shape: f32[1,128], index: 4, kind: input, shape index: {}]
  %s5 = inlined_call_operand.vmem [shape: f32[128,6], index: 5, kind: input, shape index: {}]
  %s6 = inlined_call_operand.vmem [shape: f32[1,6], index: 6, kind: input, shape index: {}]
  %s7 = inlined_call_operand.vmem [shape: f32[8,6], index: 7, kind: output, shape index: {}]
  %s8 = sld [smem:[#allocation0]]
  $region38: #{diffusion_loc_model_bev_forward.3} parent=0
    _
  %s10 = ssub.s32 1, %s8
  %s11 = scalar_select 0, %s10, %s8
  // Predicated region
  $region2: #{diffusion_loc_model_bev_forward.3} parent=0 // pred_check
    _
  $region3: #{diffusion_loc_model_bev_forward.3} parent=0 // pred_check_branch
    %13 = sbr.rel (0) target = $region5
  $region4: #{diffusion_loc_model_bev_forward.3} parent=0 // pred_region
    _
  $region5: #{diffusion_loc_model_bev_forward.3} parent=0 // pred_fallthru
    _
  // Predicated region
  $region6: #{diffusion_loc_model_bev_forward.3} parent=0 // pred_check
    _
  $region7: #{diffusion_loc_model_bev_forward.3} parent=0 // pred_check_branch
    %15 = sbr.rel (0) target = $region9
  $region8: #{diffusion_loc_model_bev_forward.3} parent=0 // pred_region
    _
  $region9: #{diffusion_loc_model_bev_forward.3} parent=0 // pred_fallthru
    _
  // Predicated region
  $region10: #{diffusion_loc_model_bev_forward.3} parent=0 // pred_check
    _
  $region11: #{diffusion_loc_model_bev_forward.3} parent=0 // pred_check_branch
    %17 = sbr.rel (0) target = $region13
  $region12: #{diffusion_loc_model_bev_forward.3} parent=0 // pred_region
    _
  $region13: #{diffusion_loc_model_bev_forward.3} parent=0 // pred_fallthru
    _
  // Predicated region
  $region14: #{diffusion_loc_model_bev_forward.3} parent=0 // pred_check
    _
  $region15: #{diffusion_loc_model_bev_forward.3} parent=0 // pred_check_branch
    %19 = sbr.rel (0) target = $region17
  $region16: #{diffusion_loc_model_bev_forward.3} parent=0 // pred_region
    _
  $region17: #{diffusion_loc_model_bev_forward.3} parent=0 // pred_fallthru
    _
  // Predicated region
  $region18: #{diffusion_loc_model_bev_forward.3} parent=0 // pred_check
    _
  $region19: #{diffusion_loc_model_bev_forward.3} parent=0 // pred_check_branch
    %21 = sbr.rel (0) target = $region21
  $region20: #{diffusion_loc_model_bev_forward.3} parent=0 // pred_region
    _
  $region21: #{diffusion_loc_model_bev_forward.3} parent=0 // pred_fallthru
    _
  // Predicated region
  $region22: #{diffusion_loc_model_bev_forward.3} parent=0 // pred_check
    _
  $region23: #{diffusion_loc_model_bev_forward.3} parent=0 // pred_check_branch
    %23 = sbr.rel (0) target = $region25
  $region24: #{diffusion_loc_model_bev_forward.3} parent=0 // pred_region
    _
  $region25: #{diffusion_loc_model_bev_forward.3} parent=0 // pred_fallthru
    _
  // Predicated region
  $region26: #{diffusion_loc_model_bev_forward.3} parent=0 // pred_check
    _
  $region27: #{diffusion_loc_model_bev_forward.3} parent=0 // pred_check_branch
    %25 = sbr.rel (0) target = $region29
  $region28: #{diffusion_loc_model_bev_forward.3} parent=0 // pred_region
    _
  $region29: #{diffusion_loc_model_bev_forward.3} parent=0 // pred_fallthru
    _
  %v26 = vld [vmem:[%s0] sm:$0xff]
  %v27 = vld [vmem:[%s1] sm:$0xff]
  %v28 = vld [vmem:[%s1 + $0x8] sm:$0xff]
  %v29 = vld [vmem:[%s1 + $0x10] sm:$0xff]
  %v30 = vld [vmem:[%s1 + $0x18] sm:$0xff]
  %v31 = vld [vmem:[%s1 + $0x20] sm:$0xff]
  %v32 = vld [vmem:[%s1 + $0x28] sm:$0xff]
  %v33 = vld [vmem:[%s1 + $0x30] sm:$0xff]
  %v34 = vld [vmem:[%s1 + $0x38] sm:$0xff]
  %v35 = vld [vmem:[%s1 + $0x40] sm:$0xff]
  %v36 = vld [vmem:[%s1 + $0x48] sm:$0xff]
  %v37 = vld [vmem:[%s1 + $0x50] sm:$0x3f]
  %v38 = vld [vmem:[%s2] sm:$0x1]
  %v40 = vlaneseq
  %v41 = vshrl.u32 %v40, 7
  %v42 = vsub.s32 0, %v41
  %v43 = vrot.slane %v38, %v42
  %vm45 = vcmask 703488
  %v47 = vsel %vm45, %v26, 0
  %vm49 = vcmask 1045504
  %v51 = vsel %vm49, %v37, 0
  %53 = vmatprep.subr.mxu0 0.0
  %54 = vmatpush1.msra.mxu0 %v27
  %55 = vmatprep.subr.mxu0 0.0
  %56 = vmatpush1.msra.mxu0 %v28
  %57 = vmatprep.subr.mxu0 0.0
  %58 = vmatpush1.msra.mxu0 %v29
  %59 = vmatprep.subr.mxu0 0.0
  %60 = vmatpush1.msra.mxu0 %v30
  %61 = vmatprep.subr.mxu0 0.0
  %62 = vmatpush1.msra.mxu0 %v31
  %63 = vmatprep.subr.mxu0 0.0
  %64 = vmatpush1.msra.mxu0 %v32
  %65 = vmatprep.subr.mxu0 0.0
  %66 = vmatpush1.msra.mxu0 %v33
  %67 = vmatprep.subr.mxu0 0.0
  %68 = vmatpush1.msra.mxu0 %v34
  %69 = vmatprep.subr.mxu0 0.0
  %70 = vmatpush1.msra.mxu0 %v35
  %71 = vmatprep.subr.mxu0 0.0
  %72 = vmatpush1.msra.mxu0 %v36
  %73 = vmatprep.subr.mxu0 0.0
  %74 = vmatpush1.msra.mxu0 %v51
  %75 = vmatprep.subr.mxu0 0.0
  %76 = vmatpush1.msra.mxu0 0.0
  %77 = vmatprep.subr.mxu0 0.0
  %78 = vmatpush1.msra.mxu0 0.0
  %79 = vmatprep.subr.mxu0 0.0
  %80 = vmatpush1.msra.mxu0 0.0
  %81 = vmatprep.subr.mxu0 0.0
  %82 = vmatpush1.msra.mxu0 0.0
  %83 = vmatprep.subr.mxu0 0.0
  %84 = vmatpush1.msra.mxu0 0.0
  %85 = vmatprep.subr.mxu0 0.0
  %86 = vmatpush1.msra.mxu0 0.0
  %87 = vmatprep.subr.mxu0 0.0
  %88 = vmatpush1.msra.mxu0 0.0
  %89 = vmatprep.subr.mxu0 0.0
  %90 = vmatpush1.msra.mxu0 0.0
  %91 = vmatprep.subr.mxu0 0.0
  %92 = vmatpush1.msra.mxu0 0.0
  %93 = vmatprep.subr.mxu0 0.0
  %94 = vmatpush1.msra.mxu0 0.0
  %95 = vmatprep.subr.mxu0 0.0
  %96 = vmatpush1.msra.mxu0 0.0
  %97 = vmatprep.subr.mxu0 0.0
  %98 = vmatpush1.msra.mxu0 0.0
  %99 = vmatprep.subr.mxu0 0.0
  %100 = vmatpush1.msra.mxu0 0.0
  %101 = vmatprep.subr.mxu0 0.0
  %102 = vmatpush1.msra.mxu0 0.0
  %103 = vmatprep.subr.mxu0 0.0
  %104 = vmatpush1.msra.mxu0 0.0
  %105 = vmatprep.subr.mxu0 0.0
  %106 = vmatpush1.msra.mxu0 0.0
  %107 = vmatprep.subr.mxu0 0.0
  %108 = vmatpush1.msra.mxu0 0.0
  %109 = vmatprep.subr.mxu0 0.0
  %110 = vmatpush1.msra.mxu0 0.0
  %111 = vmatprep.subr.mxu0 0.0
  %112 = vmatpush1.msra.mxu0 0.0
  %113 = vmatprep.subr.mxu0 0.0
  %114 = vmatpush1.msra.mxu0 0.0
  %115 = vmatprep.subr.mxu0 0.0
  %116 = vmatpush1.msra.mxu0 0.0
  %117 = vmatprep.mubr.f32.mxu0 0.0
  %118 = vmatmul.mubr.f32.gmra.mrb[0].mxu0 %v47
  %v119 = vpop.f32.mrb[0].mxu0
  %v120 = vadd.f32 %v43, %v119
  %v121 = vpop.f32.mrb[0].mxu0
  %122 = vdwg.mxu0
  %v123 = vmax.f32 %v120, 0.0
  %v124 = vld [vmem:[%s3] sm:$0xff]
  %v125 = vld [vmem:[%s3 + $0x8] sm:$0xff]
  %v126 = vld [vmem:[%s3 + $0x10] sm:$0xff]
  %v127 = vld [vmem:[%s3 + $0x18] sm:$0xff]
  %v128 = vld [vmem:[%s3 + $0x20] sm:$0xff]
  %v129 = vld [vmem:[%s3 + $0x28] sm:$0xff]
  %v130 = vld [vmem:[%s3 + $0x30] sm:$0xff]
  %v131 = vld [vmem:[%s3 + $0x38] sm:$0xff]
  %v132 = vld [vmem:[%s3 + $0x40] sm:$0xff]
  %v133 = vld [vmem:[%s3 + $0x48] sm:$0xff]
  %v134 = vld [vmem:[%s3 + $0x50] sm:$0xff]
  %v135 = vld [vmem:[%s3 + $0x58] sm:$0xff]
  %v136 = vld [vmem:[%s3 + $0x60] sm:$0xff]
  %v137 = vld [vmem:[%s3 + $0x68] sm:$0xff]
  %v138 = vld [vmem:[%s3 + $0x70] sm:$0xff]
  %v139 = vld [vmem:[%s3 + $0x78] sm:$0xff]
  %v140 = vld [vmem:[%s4] sm:$0x1]
  %v142 = vlaneseq
  %v143 = vshrl.u32 %v142, 7
  %v144 = vsub.s32 0, %v143
  %v145 = vrot.slane %v140, %v144
  %147 = vmatprep.subr.mxu0 0.0
  %148 = vmatpush1.msra.mxu0 %v124
  %149 = vmatprep.subr.mxu0 0.0
  %150 = vmatpush1.msra.mxu0 %v125
  %151 = vmatprep.subr.mxu0 0.0
  %152 = vmatpush1.msra.mxu0 %v126
  %153 = vmatprep.subr.mxu0 0.0
  %154 = vmatpush1.msra.mxu0 %v127
  %155 = vmatprep.subr.mxu0 0.0
  %156 = vmatpush1.msra.mxu0 %v128
  %157 = vmatprep.subr.mxu0 0.0
  %158 = vmatpush1.msra.mxu0 %v129
  %159 = vmatprep.subr.mxu0 0.0
  %160 = vmatpush1.msra.mxu0 %v130
  %161 = vmatprep.subr.mxu0 0.0
  %162 = vmatpush1.msra.mxu0 %v131
  %163 = vmatprep.subr.mxu0 0.0
  %164 = vmatpush1.msra.mxu0 %v132
  %165 = vmatprep.subr.mxu0 0.0
  %166 = vmatpush1.msra.mxu0 %v133
  %167 = vmatprep.subr.mxu0 0.0
  %168 = vmatpush1.msra.mxu0 %v134
  %169 = vmatprep.subr.mxu0 0.0
  %170 = vmatpush1.msra.mxu0 %v135
  %171 = vmatprep.subr.mxu0 0.0
  %172 = vmatpush1.msra.mxu0 %v136
  %173 = vmatprep.subr.mxu0 0.0
  %174 = vmatpush1.msra.mxu0 %v137
  %175 = vmatprep.subr.mxu0 0.0
  %176 = vmatpush1.msra.mxu0 %v138
  %177 = vmatprep.subr.mxu0 0.0
  %178 = vmatpush1.msra.mxu0 %v139
  %179 = vmatprep.subr.mxu0 0.0
  %180 = vmatpush1.msra.mxu0 0.0
  %181 = vmatprep.subr.mxu0 0.0
  %182 = vmatpush1.msra.mxu0 0.0
  %183 = vmatprep.subr.mxu0 0.0
  %184 = vmatpush1.msra.mxu0 0.0
  %185 = vmatprep.subr.mxu0 0.0
  %186 = vmatpush1.msra.mxu0 0.0
  %187 = vmatprep.subr.mxu0 0.0
  %188 = vmatpush1.msra.mxu0 0.0
  %189 = vmatprep.subr.mxu0 0.0
  %190 = vmatpush1.msra.mxu0 0.0
  %191 = vmatprep.subr.mxu0 0.0
  %192 = vmatpush1.msra.mxu0 0.0
  %193 = vmatprep.subr.mxu0 0.0
  %194 = vmatpush1.msra.mxu0 0.0
  %195 = vmatprep.subr.mxu0 0.0
  %196 = vmatpush1.msra.mxu0 0.0
  %197 = vmatprep.subr.mxu0 0.0
  %198 = vmatpush1.msra.mxu0 0.0
  %199 = vmatprep.subr.mxu0 0.0
  %200 = vmatpush1.msra.mxu0 0.0
  %201 = vmatprep.subr.mxu0 0.0
  %202 = vmatpush1.msra.mxu0 0.0
  %203 = vmatprep.subr.mxu0 0.0
  %204 = vmatpush1.msra.mxu0 0.0
  %205 = vmatprep.subr.mxu0 0.0
  %206 = vmatpush1.msra.mxu0 0.0
  %207 = vmatprep.subr.mxu0 0.0
  %208 = vmatpush1.msra.mxu0 0.0
  %209 = vmatprep.subr.mxu0 0.0
  %210 = vmatpush1.msra.mxu0 0.0
  %211 = vmatprep.mubr.f32.mxu0 0.0
  %212 = vmatmul.mubr.f32.gmra.mrb[0].mxu0 %v123
  %v213 = vpop.f32.mrb[0].mxu0
  %v214 = vadd.f32 %v145, %v213
  %v215 = vpop.f32.mrb[0].mxu0
  %216 = vdwg.mxu0
  %v217 = vmax.f32 %v214, 0.0
  %v218 = vld [vmem:[%s5] sm:$0xff]
  %v219 = vld [vmem:[%s5 + $0x8] sm:$0xff]
  %v220 = vld [vmem:[%s5 + $0x10] sm:$0xff]
  %v221 = vld [vmem:[%s5 + $0x18] sm:$0xff]
  %v222 = vld [vmem:[%s5 + $0x20] sm:$0xff]
  %v223 = vld [vmem:[%s5 + $0x28] sm:$0xff]
  %v224 = vld [vmem:[%s5 + $0x30] sm:$0xff]
  %v225 = vld [vmem:[%s5 + $0x38] sm:$0xff]
  %v226 = vld [vmem:[%s5 + $0x40] sm:$0xff]
  %v227 = vld [vmem:[%s5 + $0x48] sm:$0xff]
  %v228 = vld [vmem:[%s5 + $0x50] sm:$0xff]
  %v229 = vld [vmem:[%s5 + $0x58] sm:$0xff]
  %v230 = vld [vmem:[%s5 + $0x60] sm:$0xff]
  %v231 = vld [vmem:[%s5 + $0x68] sm:$0xff]
  %v232 = vld [vmem:[%s5 + $0x70] sm:$0xff]
  %v233 = vld [vmem:[%s5 + $0x78] sm:$0xff]
  %v234 = vld [vmem:[%s6] sm:$0x1]
  %v236 = vlaneseq
  %v237 = vshrl.u32 %v236, 7
  %v238 = vsub.s32 0, %v237
  %v239 = vrot.slane %v234, %v238
  %241 = vmatprep.subr.mxu0 0.0
  %242 = vmatpush1.msra.mxu0 %v218
  %243 = vmatprep.subr.mxu0 0.0
  %244 = vmatpush1.msra.mxu0 %v219
  %245 = vmatprep.subr.mxu0 0.0
  %246 = vmatpush1.msra.mxu0 %v220
  %247 = vmatprep.subr.mxu0 0.0
  %248 = vmatpush1.msra.mxu0 %v221
  %249 = vmatprep.subr.mxu0 0.0
  %250 = vmatpush1.msra.mxu0 %v222
  %251 = vmatprep.subr.mxu0 0.0
  %252 = vmatpush1.msra.mxu0 %v223
  %253 = vmatprep.subr.mxu0 0.0
  %254 = vmatpush1.msra.mxu0 %v224
  %255 = vmatprep.subr.mxu0 0.0
  %256 = vmatpush1.msra.mxu0 %v225
  %257 = vmatprep.subr.mxu0 0.0
  %258 = vmatpush1.msra.mxu0 %v226
  %259 = vmatprep.subr.mxu0 0.0
  %260 = vmatpush1.msra.mxu0 %v227
  %261 = vmatprep.subr.mxu0 0.0
  %262 = vmatpush1.msra.mxu0 %v228
  %263 = vmatprep.subr.mxu0 0.0
  %264 = vmatpush1.msra.mxu0 %v229
  %265 = vmatprep.subr.mxu0 0.0
  %266 = vmatpush1.msra.mxu0 %v230
  %267 = vmatprep.subr.mxu0 0.0
  %268 = vmatpush1.msra.mxu0 %v231
  %269 = vmatprep.subr.mxu0 0.0
  %270 = vmatpush1.msra.mxu0 %v232
  %271 = vmatprep.subr.mxu0 0.0
  %272 = vmatpush1.msra.mxu0 %v233
  %273 = vmatprep.subr.mxu0 0.0
  %274 = vmatpush1.msra.mxu0 0.0
  %275 = vmatprep.subr.mxu0 0.0
  %276 = vmatpush1.msra.mxu0 0.0
  %277 = vmatprep.subr.mxu0 0.0
  %278 = vmatpush1.msra.mxu0 0.0
  %279 = vmatprep.subr.mxu0 0.0
  %280 = vmatpush1.msra.mxu0 0.0
  %281 = vmatprep.subr.mxu0 0.0
  %282 = vmatpush1.msra.mxu0 0.0
  %283 = vmatprep.subr.mxu0 0.0
  %284 = vmatpush1.msra.mxu0 0.0
  %285 = vmatprep.subr.mxu0 0.0
  %286 = vmatpush1.msra.mxu0 0.0
  %287 = vmatprep.subr.mxu0 0.0
  %288 = vmatpush1.msra.mxu0 0.0
  %289 = vmatprep.subr.mxu0 0.0
  %290 = vmatpush1.msra.mxu0 0.0
  %291 = vmatprep.subr.mxu0 0.0
  %292 = vmatpush1.msra.mxu0 0.0
  %293 = vmatprep.subr.mxu0 0.0
  %294 = vmatpush1.msra.mxu0 0.0
  %295 = vmatprep.subr.mxu0 0.0
  %296 = vmatpush1.msra.mxu0 0.0
  %297 = vmatprep.subr.mxu0 0.0
  %298 = vmatpush1.msra.mxu0 0.0
  %299 = vmatprep.subr.mxu0 0.0
  %300 = vmatpush1.msra.mxu0 0.0
  %301 = vmatprep.subr.mxu0 0.0
  %302 = vmatpush1.msra.mxu0 0.0
  %303 = vmatprep.subr.mxu0 0.0
  %304 = vmatpush1.msra.mxu0 0.0
  %305 = vmatprep.mubr.f32.mxu0 0.0
  %306 = vmatmul.mubr.f32.gmra.mrb[0].mxu0 %v217
  %v307 = vpop.f32.mrb[0].mxu0
  %v308 = vadd.f32 %v239, %v307
  %v309 = vpop.f32.mrb[0].mxu0
  %310 = vdwg.mxu0
  %vm311 = vcmask 48128
  %312 = vst.msk [vmem:[%s7] sm:$0xff] %vm311, %v308
  // Predicated region
  $region30: #{diffusion_loc_model_bev_forward.3} parent=0 // pred_check
    _
  $region31: #{diffusion_loc_model_bev_forward.3} parent=0 // pred_check_branch
    %314 = sbr.rel (0) target = $region33
  $region32: #{diffusion_loc_model_bev_forward.3} parent=0 // pred_region
    _
  $region33: #{diffusion_loc_model_bev_forward.3} parent=0 // pred_fallthru
    _
  // Predicated region
  $region34: #{diffusion_loc_model_bev_forward.3} parent=0 // pred_check
    _
  $region35: #{diffusion_loc_model_bev_forward.3} parent=0 // pred_check_branch
    %316 = sbr.rel (0) target = $region37
  $region36: #{diffusion_loc_model_bev_forward.3} parent=0 // pred_region
    _
  $region37: #{diffusion_loc_model_bev_forward.3} parent=0 // pred_fallthru
    _

// kernel: diffusion_loc_model_bev_forward.2
$region0: #{diffusion_loc_model_bev_forward.2}
  #allocation0 [shape = 'u32[]', space=smem, size = 0x4, offset = 0x4, fixed_abs, tag = 'smem constant byte address 0x4 - core index']
  #allocation1 [shape = 'u32[144,128]{1,0:T(1,128)}', space=vmem, size = 0x12000, scoped, tag = 'internal scratch']
  #allocation2 [shape = 'f32[1,32]{1,0:T(1,128)}', space=vmem, size = 0x200, scoped, tag = 'scratch operand']
  %s0 = inlined_call_operand.vmem [shape: bf16[8,256,48], index: 0, kind: input, shape index: {}]
  %s1 = inlined_call_operand.vmem [shape: bf16[48,32], index: 1, kind: input, shape index: {}]
  %s2 = inlined_call_operand.vmem [shape: f32[1,32], index: 2, kind: input, shape index: {}]
  %s3 = inlined_call_operand.vmem [shape: f32[32,64], index: 3, kind: input, shape index: {}]
  %s4 = inlined_call_operand.vmem [shape: f32[1,64], index: 4, kind: input, shape index: {}]
  %s5 = inlined_call_operand.vmem [shape: f32[8,1,64], index: 5, kind: output, shape index: {}]
  %s6 = sld [smem:[#allocation0]]
  $region61: #{diffusion_loc_model_bev_forward.2} parent=0
    _
  %s8 = ssub.s32 1, %s6
  %s9 = scalar_select 0, %s8, %s6
  loop: start=0, step=1, limit=10
  $region2: #{diffusion_loc_model_bev_forward.2} parent=0 // loop_pre_header
    _
  $region3: #{diffusion_loc_model_bev_forward.2} parent=0 // loop_header
    %s11 = sphi 0, %s15
    %p12 = scmp.ge.s32.totalorder %s11, 10
    %s18 = sphi 0, %s30
    %s19 = sphi 0, %s26
    %s20 = sphi 0, %s18
    %s21 = sphi 0, %s19
    %s22 = sphi 0, %s20
    %s23 = sphi 0, %s21
    %s35 = sphi 0, %s37
    %s38 = sphi 0, %s35
    %s39 = sphi 0, %s38
    %s55 = sphi 0, %s39
    %s59 = sphi 0, %s59
    %s61 = sphi 0, %s59
    %s62 = sphi 0, %s61
    %s76 = sphi 0, %s62
    %s80 = sphi 0, %s80
    %s82 = sphi 0, %s80
    %s83 = sphi 0, %s82
    %s97 = sphi 0, %s83
    %s101 = sphi 0, %s101
    %s103 = sphi 0, %s101
    %s104 = sphi 0, %s103
    %s118 = sphi 0, %s104
    %s122 = sphi 0, %s122
    %s124 = sphi 0, %s122
    %s125 = sphi 0, %s124
    %s139 = sphi 0, %s125
    %s145 = sphi 0, %s147
    %s148 = sphi 0, %s145
    %s149 = sphi 0, %s148
    %s165 = sphi 0, %s149
  $region4: #{diffusion_loc_model_bev_forward.2} parent=0 // loop_header_branch
    %14 = sbr.rel (%p12) target = $region8
  $region5: #{diffusion_loc_model_bev_forward.2} parent=0 // loop_body
    %s16 = ssub.s32 %s11, 1
    %s17 = ssub.s32 %s11, 2
    %s24 = sadd.s32 1, %s19
    %p25 = scmp.ge.s32.totalorder %s24, 1
    %s26 = scalar_select %p25, 0, %s24
    %s27 = sadd.s32 1, %s18
    %s28 = scalar_select %p25, %s27, %s18
    %p29 = scmp.ge.s32.totalorder %s28, 8
    %s30 = scalar_select %p29, 0, %s28
    %s31 = ssub.s32 %s18, %s30
    %s32 = ssub.s32 %s19, %s26
    %s33 = sor.u32 %s31, %s32
    %p34 = scmp.eq.s32.totalorder %s33, 0
    %s36 = sadd.s32 %s35, 1
    %s37 = scalar_select %p34, %s35, %s36
    %p40 = pneg %p34
    %p41 = scmp.eq.s32.totalorder %s11, 7
    %p42 = por %p40, %p41
    %p43 = scmp.ne.s32.totalorder %s35, %s38
    %p44 = scmp.eq.s32.totalorder %s11, 0
    %p45 = por %p43, %p44
    %p46 = scmp.ne.s32.totalorder %s35, %s38
    %p47 = scmp.eq.s32.totalorder %s16, 7
    %p48 = por %p46, %p47
    %p49 = scmp.ne.s32.totalorder %s38, %s39
    %p50 = scmp.eq.s32.totalorder %s16, 0
    %p51 = por %p49, %p50
    %p52 = scmp.ne.s32.totalorder %s38, %s39
    %p53 = scmp.eq.s32.totalorder %s17, 7
    %p54 = por %p52, %p53
    %p56 = scmp.ne.s32.totalorder %s39, %s55
    %p57 = scmp.eq.s32.totalorder %s17, 0
    %p58 = por %p56, %p57
    %s60 = sadd.s32 %s59, 1
    %p63 = scmp.eq.s32.totalorder %s11, 7
    %p64 = scmp.ne.s32.totalorder %s59, %s61
    %p65 = scmp.eq.s32.totalorder %s11, 0
    %p66 = por %p64, %p65
    %p67 = scmp.ne.s32.totalorder %s59, %s61
    %p68 = scmp.eq.s32.totalorder %s16, 7
    %p69 = por %p67, %p68
    %p70 = scmp.ne.s32.totalorder %s61, %s62
    %p71 = scmp.eq.s32.totalorder %s16, 0
    %p72 = por %p70, %p71
    %p73 = scmp.ne.s32.totalorder %s61, %s62
    %p74 = scmp.eq.s32.totalorder %s17, 7
    %p75 = por %p73, %p74
    %p77 = scmp.ne.s32.totalorder %s62, %s76
    %p78 = scmp.eq.s32.totalorder %s17, 0
    %p79 = por %p77, %p78
    %s81 = sadd.s32 %s80, 1
    %p84 = scmp.eq.s32.totalorder %s11, 7
    %p85 = scmp.ne.s32.totalorder %s80, %s82
    %p86 = scmp.eq.s32.totalorder %s11, 0
    %p87 = por %p85, %p86
    %p88 = scmp.ne.s32.totalorder %s80, %s82
    %p89 = scmp.eq.s32.totalorder %s16, 7
    %p90 = por %p88, %p89
    %p91 = scmp.ne.s32.totalorder %s82, %s83
    %p92 = scmp.eq.s32.totalorder %s16, 0
    %p93 = por %p91, %p92
    %p94 = scmp.ne.s32.totalorder %s82, %s83
    %p95 = scmp.eq.s32.totalorder %s17, 7
    %p96 = por %p94, %p95
    %p98 = scmp.ne.s32.totalorder %s83, %s97
    %p99 = scmp.eq.s32.totalorder %s17, 0
    %p100 = por %p98, %p99
    %s102 = sadd.s32 %s101, 1
    %p105 = scmp.eq.s32.totalorder %s11, 7
    %p106 = scmp.ne.s32.totalorder %s101, %s103
    %p107 = scmp.eq.s32.totalorder %s11, 0
    %p108 = por %p106, %p107
    %p109 = scmp.ne.s32.totalorder %s101, %s103
    %p110 = scmp.eq.s32.totalorder %s16, 7
    %p111 = por %p109, %p110
    %p112 = scmp.ne.s32.totalorder %s103, %s104
    %p113 = scmp.eq.s32.totalorder %s16, 0
    %p114 = por %p112, %p113
    %p115 = scmp.ne.s32.totalorder %s103, %s104
    %p116 = scmp.eq.s32.totalorder %s17, 7
    %p117 = por %p115, %p116
    %p119 = scmp.ne.s32.totalorder %s104, %s118
    %p120 = scmp.eq.s32.totalorder %s17, 0
    %p121 = por %p119, %p120
    %s123 = sadd.s32 %s122, 1
    %p126 = scmp.eq.s32.totalorder %s11, 7
    %p127 = scmp.ne.s32.totalorder %s122, %s124
    %p128 = scmp.eq.s32.totalorder %s11, 0
    %p129 = por %p127, %p128
    %p130 = scmp.ne.s32.totalorder %s122, %s124
    %p131 = scmp.eq.s32.totalorder %s16, 7
    %p132 = por %p130, %p131
    %p133 = scmp.ne.s32.totalorder %s124, %s125
    %p134 = scmp.eq.s32.totalorder %s16, 0
    %p135 = por %p133, %p134
    %p136 = scmp.ne.s32.totalorder %s124, %s125
    %p137 = scmp.eq.s32.totalorder %s17, 7
    %p138 = por %p136, %p137
    %p140 = scmp.ne.s32.totalorder %s125, %s139
    %p141 = scmp.eq.s32.totalorder %s17, 0
    %p142 = por %p140, %p141
    %s143 = ssub.s32 %s18, %s30
    %p144 = scmp.eq.s32.totalorder %s143, 0
    %s146 = sadd.s32 %s145, 1
    %s147 = scalar_select %p144, %s145, %s146
    %p150 = pneg %p144
    %p151 = scmp.eq.s32.totalorder %s11, 7
    %p152 = por %p150, %p151
    %p153 = scmp.ne.s32.totalorder %s145, %s148
    %p154 = scmp.eq.s32.totalorder %s11, 0
    %p155 = por %p153, %p154
    %p156 = scmp.ne.s32.totalorder %s145, %s148
    %p157 = scmp.eq.s32.totalorder %s16, 7
    %p158 = por %p156, %p157
    %p159 = scmp.ne.s32.totalorder %s148, %s149
    %p160 = scmp.eq.s32.totalorder %s16, 0
    %p161 = por %p159, %p160
    %p162 = scmp.ne.s32.totalorder %s148, %s149
    %p163 = scmp.eq.s32.totalorder %s17, 7
    %p164 = por %p162, %p163
    %p166 = scmp.ne.s32.totalorder %s149, %s165
    %p167 = scmp.eq.s32.totalorder %s17, 0
    %p168 = por %p166, %p167
    %p169 = scmp.le.s32.totalorder 1, %s11
    %p170 = scmp.lt.s32.totalorder %s11, 9
    %p171 = pnand %p169, %p170
    %p172 = pneg %p171
    // Predicated region
    $region9: #{diffusion_loc_model_bev_forward.2} parent=5 // pred_check
      _
    $region10: #{diffusion_loc_model_bev_forward.2} parent=5 // pred_check_branch
      %174 = sbr.rel (%p171) target = $region12
    $region11: #{diffusion_loc_model_bev_forward.2} parent=5 // pred_region
      %s175 = ssub.s32 %s11, 1
      // Predicated region
      $region13: #{diffusion_loc_model_bev_forward.2} parent=11 // pred_check
        %p176 = pneg %p72
      $region14: #{diffusion_loc_model_bev_forward.2} parent=11 // pred_check_branch
        %178 = sbr.rel (%p176) target = $region16
      $region15: #{diffusion_loc_model_bev_forward.2} parent=11 // pred_region
        _
      $region16: #{diffusion_loc_model_bev_forward.2} parent=11 // pred_fallthru
        _
      // Predicated region
      $region17: #{diffusion_loc_model_bev_forward.2} parent=11 // pred_check
        %p179 = pneg %p93
      $region18: #{diffusion_loc_model_bev_forward.2} parent=11 // pred_check_branch
        %181 = sbr.rel (%p179) target = $region20
      $region19: #{diffusion_loc_model_bev_forward.2} parent=11 // pred_region
        _
      $region20: #{diffusion_loc_model_bev_forward.2} parent=11 // pred_fallthru
        _
      // Predicated region
      $region21: #{diffusion_loc_model_bev_forward.2} parent=11 // pred_check
        %p182 = pneg %p114
      $region22: #{diffusion_loc_model_bev_forward.2} parent=11 // pred_check_branch
        %184 = sbr.rel (%p182) target = $region24
      $region23: #{diffusion_loc_model_bev_forward.2} parent=11 // pred_region
        _
      $region24: #{diffusion_loc_model_bev_forward.2} parent=11 // pred_fallthru
        _
      // Predicated region
      $region25: #{diffusion_loc_model_bev_forward.2} parent=11 // pred_check
        %p185 = pneg %p135
      $region26: #{diffusion_loc_model_bev_forward.2} parent=11 // pred_check_branch
        %187 = sbr.rel (%p185) target = $region28
      $region27: #{diffusion_loc_model_bev_forward.2} parent=11 // pred_region
        _
      $region28: #{diffusion_loc_model_bev_forward.2} parent=11 // pred_fallthru
        _
    $region12: #{diffusion_loc_model_bev_forward.2} parent=5 // pred_fallthru
      _
    %p188 = scmp.lt.s32.totalorder %s11, 8
    // Predicated region
    $region29: #{diffusion_loc_model_bev_forward.2} parent=5 // pred_check
      %p189 = pneg %p188
    $region30: #{diffusion_loc_model_bev_forward.2} parent=5 // pred_check_branch
      %191 = sbr.rel (%p189) target = $region32
    $region31: #{diffusion_loc_model_bev_forward.2} parent=5 // pred_region
      // Predicated region
      $region33: #{diffusion_loc_model_bev_forward.2} parent=31 // pred_check
        %p192 = pneg %p45
      $region34: #{diffusion_loc_model_bev_forward.2} parent=31 // pred_check_branch
        %194 = sbr.rel (%p192) target = $region36
      $region35: #{diffusion_loc_model_bev_forward.2} parent=31 // pred_region
        %s195 = smul.u32 32, %s19
        %p196 = scmp.lt.s32.totalorder %s18, 7
        %s197 = scalar_select %p196, %s18, 7
        %p198 = scmp.lt.s32.totalorder %s195, 31
        %s199 = scalar_select %p198, %s195, 31
        %s200 = smul.addr %s197, 32
        %s201 = sadd.s32 %s199, %s200
        %s202 = smul.addr %s201, 4
        %s203 = scalar_lea.vmem %s0, %s202
        %s204 = smul.u32 32, %s19
      $region36: #{diffusion_loc_model_bev_forward.2} parent=31 // pred_fallthru
        _
    $region32: #{diffusion_loc_model_bev_forward.2} parent=5 // pred_fallthru
      _
    %p205 = scmp.le.s32.totalorder 1, %s11
    %p206 = scmp.lt.s32.totalorder %s11, 9
    %p207 = pnand %p205, %p206
    %p208 = pneg %p207
    // Predicated region
    $region37: #{diffusion_loc_model_bev_forward.2} parent=5 // pred_check
      _
    $region38: #{diffusion_loc_model_bev_forward.2} parent=5 // pred_check_branch
      %210 = sbr.rel (%p207) target = $region40
    $region39: #{diffusion_loc_model_bev_forward.2} parent=5 // pred_region
      %s211 = ssub.s32 %s11, 1
      %s212 = smul.u32 32, %s21
      %p213 = scmp.lt.s32.totalorder %s20, 7
      %s214 = scalar_select %p213, %s20, 7
      %p215 = scmp.lt.s32.totalorder %s212, 31
      %s216 = scalar_select %p215, %s212, 31
      %s217 = smul.addr %s214, 32
      %s218 = sadd.s32 %s216, %s217
      %s219 = smul.addr %s218, 4
      %s220 = scalar_lea.vmem %s0, %s219
      %p221 = pneg %p51
      %p222 = pneg %p48
      %p223 = pneg %p72
      %p224 = pneg %p69
      %p225 = pneg %p93
      %p226 = pneg %p90
      %p227 = pneg %p114
      %p228 = pneg %p111
      %p229 = pneg %p135
      %p230 = pneg %p132
      %p231 = pneg %p161
      %p232 = pneg %p158
      %p233 = scmp.lt.s32.totalorder %s20, 7
      %s234 = scalar_select %p233, %s20, 7
      %s235 = scalar_lea.vmem %s5, %s234
      %s236 = smul.u32 32, %s21
      %p237 = scmp.lt.s32.totalorder %s20, 7
      %s238 = scalar_select %p237, %s20, 7
      %p239 = scmp.lt.s32.totalorder %s236, 31
      %s240 = scalar_select %p239, %s236, 31
      %s241 = smul.addr %s238, 32
      %s242 = sadd.s32 %s240, %s241
      %s243 = smul.addr %s242, 4
      %s244 = scalar_lea.vmem %s0, %s243
      %s245 = smul.u32 32, %s21
      %p246 = scmp.lt.s32.totalorder %s20, 7
      %s247 = scalar_select %p246, %s20, 7
      %s248 = scalar_lea.vmem %s5, %s247
      %p250 = scmp.eq.s32.totalorder %s21, 0
      // Predicated region
      $region41: #{diffusion_loc_model_bev_forward.2} parent=39 // pred_check
        %p251 = pneg %p250
      $region42: #{diffusion_loc_model_bev_forward.2} parent=39 // pred_check_branch
        %253 = sbr.rel (%p251) target = $region44
      $region43: #{diffusion_loc_model_bev_forward.2} parent=39 // pred_region
        %vm254 = vcmask 253952
        %255 = vst.msk [vmem:[#allocation2] sm:$0x1] %vm254, 0.0
      $region44: #{diffusion_loc_model_bev_forward.2} parent=39 // pred_fallthru
        _
      %v256 = vld [vmem:[%s244] sm:$0xf]
      %v257 = vld [vmem:[%s244 + $0x4] sm:$0xf]
      %v258 = vld [vmem:[%s244 + $0x8] sm:$0xf]
      %v259 = vld [vmem:[%s244 + $0xc] sm:$0xf]
      %v260 = vld [vmem:[%s244 + $0x10] sm:$0xf]
      %v261 = vld [vmem:[%s244 + $0x14] sm:$0xf]
      %v262 = vld [vmem:[%s244 + $0x18] sm:$0xf]
      %v263 = vld [vmem:[%s244 + $0x1c] sm:$0xf]
      %v264 = vld [vmem:[%s244 + $0x20] sm:$0xf]
      %v265 = vld [vmem:[%s244 + $0x24] sm:$0xf]
      %v266 = vld [vmem:[%s244 + $0x28] sm:$0xf]
      %v267 = vld [vmem:[%s244 + $0x2c] sm:$0xf]
      %v268 = vld [vmem:[%s244 + $0x30] sm:$0xf]
      %v269 = vld [vmem:[%s244 + $0x34] sm:$0xf]
      %v270 = vld [vmem:[%s244 + $0x38] sm:$0xf]
      %v271 = vld [vmem:[%s244 + $0x3c] sm:$0xf]
      %v272 = vld [vmem:[%s244 + $0x40] sm:$0xf]
      %v273 = vld [vmem:[%s244 + $0x44] sm:$0xf]
      %v274 = vld [vmem:[%s244 + $0x48] sm:$0xf]
      %v275 = vld [vmem:[%s244 + $0x4c] sm:$0xf]
      %v276 = vld [vmem:[%s244 + $0x50] sm:$0xf]
      %v277 = vld [vmem:[%s244 + $0x54] sm:$0xf]
      %v278 = vld [vmem:[%s244 + $0x58] sm:$0xf]
      %v279 = vld [vmem:[%s244 + $0x5c] sm:$0xf]
      %v280 = vld [vmem:[%s244 + $0x60] sm:$0xf]
      %v281 = vld [vmem:[%s244 + $0x64] sm:$0xf]
      %v282 = vld [vmem:[%s244 + $0x68] sm:$0xf]
      %v283 = vld [vmem:[%s244 + $0x6c] sm:$0xf]
      %v284 = vld [vmem:[%s244 + $0x70] sm:$0xf]
      %v285 = vld [vmem:[%s244 + $0x74] sm:$0xf]
      %v286 = vld [vmem:[%s244 + $0x78] sm:$0xf]
      %v287 = vld [vmem:[%s244 + $0x7c] sm:$0xf]
      %v288 = vld [vmem:[%s1] sm:$0xf]
      %v289 = vld [vmem:[%s1 + $0x4] sm:$0xf]
      %v290 = vld [vmem:[%s1 + $0x8] sm:$0xf]
      %v291 = vld [vmem:[%s1 + $0xc] sm:$0xf]
      %v292 = vld [vmem:[%s1 + $0x10] sm:$0xf]
      %v293 = vld [vmem:[%s1 + $0x14] sm:$0xf]
      %v294 = vld [vmem:[%s2] sm:$0x1]
      %v296 = vlaneseq
      %v297 = vshrl.u32 %v296, 7
      %v298 = vsub.s32 0, %v297
      %v299 = vrot.slane %v294, %v298
      %v333 = vunpack.c.l.b16 %v256
      %v334 = vunpack.c.l.b16 %v257
      %v335 = vunpack.c.l.b16 %v258
      %v336 = vunpack.c.l.b16 %v259
      %v337 = vunpack.c.l.b16 %v260
      %v338 = vunpack.c.l.b16 %v261
      %v339 = vunpack.c.l.b16 %v262
      %v340 = vunpack.c.l.b16 %v263
      %v341 = vunpack.c.l.b16 %v264
      %v342 = vunpack.c.l.b16 %v265
      %v343 = vunpack.c.l.b16 %v266
      %v344 = vunpack.c.l.b16 %v267
      %v345 = vunpack.c.l.b16 %v268
      %v346 = vunpack.c.l.b16 %v269
      %v347 = vunpack.c.l.b16 %v270
      %v348 = vunpack.c.l.b16 %v271
      %v349 = vunpack.c.l.b16 %v272
      %v350 = vunpack.c.l.b16 %v273
      %v351 = vunpack.c.l.b16 %v274
      %v352 = vunpack.c.l.b16 %v275
      %v353 = vunpack.c.l.b16 %v276
      %v354 = vunpack.c.l.b16 %v277
      %v355 = vunpack.c.l.b16 %v278
      %v356 = vunpack.c.l.b16 %v279
      %v357 = vunpack.c.l.b16 %v280
      %v358 = vunpack.c.l.b16 %v281
      %v359 = vunpack.c.l.b16 %v282
      %v360 = vunpack.c.l.b16 %v283
      %v361 = vunpack.c.l.b16 %v284
      %v362 = vunpack.c.l.b16 %v285
      %v363 = vunpack.c.l.b16 %v286
      %v364 = vunpack.c.l.b16 %v287
      %v365 = vpack.c.b16 %v334, %v333
      %v366 = vpack.c.b16 %v336, %v335
      %v367 = vpack.c.b16 %v338, %v337
      %v368 = vpack.c.b16 %v340, %v339
      %v369 = vpack.c.b16 %v342, %v341
      %v370 = vpack.c.b16 %v344, %v343
      %v371 = vpack.c.b16 %v346, %v345
      %v372 = vpack.c.b16 %v348, %v347
      %v373 = vpack.c.b16 %v350, %v349
      %v374 = vpack.c.b16 %v352, %v351
      %v375 = vpack.c.b16 %v354, %v353
      %v376 = vpack.c.b16 %v356, %v355
      %v377 = vpack.c.b16 %v358, %v357
      %v378 = vpack.c.b16 %v360, %v359
      %v379 = vpack.c.b16 %v362, %v361
      %v380 = vpack.c.b16 %v364, %v363
      %v387 = vunpack.c.l.b16 %v288
      %v388 = vunpack.c.l.b16 %v289
      %v389 = vunpack.c.l.b16 %v290
      %v390 = vunpack.c.l.b16 %v291
      %v391 = vunpack.c.l.b16 %v292
      %v392 = vunpack.c.l.b16 %v293
      %v393 = vpack.c.b16 %v388, %v387
      %v394 = vpack.c.b16 %v390, %v389
      %v395 = vpack.c.b16 %v392, %v391
      %vm399 = vcmask 392192
      %v401 = vsel %vm399, %v365, 0
      %v404 = vsel %vm399, %v366, 0
      %v407 = vsel %vm399, %v367, 0
      %v410 = vsel %vm399, %v368, 0
      %v413 = vsel %vm399, %v369, 0
      %v416 = vsel %vm399, %v370, 0
      %v419 = vsel %vm399, %v371, 0
      %v422 = vsel %vm399, %v372, 0
      %v425 = vsel %vm399, %v373, 0
      %v428 = vsel %vm399, %v374, 0
      %v431 = vsel %vm399, %v375, 0
      %v434 = vsel %vm399, %v376, 0
      %v437 = vsel %vm399, %v377, 0
      %v440 = vsel %vm399, %v378, 0
      %v443 = vsel %vm399, %v379, 0
      %v446 = vsel %vm399, %v380, 0
      %448 = vmatprep.subr.bf16.mxu0 0
      %449 = vmatpush1.bf16.msra.mxu0 %v393
      %450 = vmatprep.subr.bf16.mxu0 0
      %451 = vmatpush1.bf16.msra.mxu0 %v394
      %452 = vmatprep.subr.bf16.mxu0 0
      %453 = vmatpush1.bf16.msra.mxu0 %v395
      %454 = vmatprep.subr.bf16.mxu0 0
      %455 = vmatpush1.bf16.msra.mxu0 0
      %456 = vmatprep.subr.bf16.mxu0 0
      %457 = vmatpush1.bf16.msra.mxu0 0
      %458 = vmatprep.subr.bf16.mxu0 0
      %459 = vmatpush1.bf16.msra.mxu0 0
      %460 = vmatprep.subr.bf16.mxu0 0
      %461 = vmatpush1.bf16.msra.mxu0 0
      %462 = vmatprep.subr.bf16.mxu0 0
      %463 = vmatpush1.bf16.msra.mxu0 0
      %464 = vmatprep.subr.bf16.mxu0 0
      %465 = vmatpush1.bf16.msra.mxu0 0
      %466 = vmatprep.subr.bf16.mxu0 0
      %467 = vmatpush1.bf16.msra.mxu0 0
      %468 = vmatprep.subr.bf16.mxu0 0
      %469 = vmatpush1.bf16.msra.mxu0 0
      %470 = vmatprep.subr.bf16.mxu0 0
      %471 = vmatpush1.bf16.msra.mxu0 0
      %472 = vmatprep.subr.bf16.mxu0 0
      %473 = vmatpush1.bf16.msra.mxu0 0
      %474 = vmatprep.subr.bf16.mxu0 0
      %475 = vmatpush1.bf16.msra.mxu0 0
      %476 = vmatprep.subr.bf16.mxu0 0
      %477 = vmatpush1.bf16.msra.mxu0 0
      %478 = vmatprep.subr.bf16.mxu0 0
      %479 = vmatpush1.bf16.msra.mxu0 0
      %480 = vmatprep.mubr.bf16.mxu0 0
      %481 = vmatmul.mubr.bf16.gmra.mrb[0].mxu0 %v401
      %v482 = vpop.f32.mrb[0].mxu0
      %v483 = vadd.f32 %v299, %v482
      %v484 = vpop.f32.mrb[0].mxu0
      %v485 = vpop.f32.mrb[0].mxu0
      %v486 = vadd.f32 %v299, %v485
      %v487 = vpop.f32.mrb[0].mxu0
      %488 = vmatprep.mubr.bf16.mxu0 0
      %489 = vmatmul.mubr.bf16.gmra.mrb[0].mxu0 %v404
      %v490 = vpop.f32.mrb[0].mxu0
      %v491 = vadd.f32 %v299, %v490
      %v492 = vpop.f32.mrb[0].mxu0
      %v493 = vpop.f32.mrb[0].mxu0
      %v494 = vadd.f32 %v299, %v493
      %v495 = vpop.f32.mrb[0].mxu0
      %496 = vmatprep.mubr.bf16.mxu0 0
      %497 = vmatmul.mubr.bf16.gmra.mrb[0].mxu0 %v407
      %v498 = vpop.f32.mrb[0].mxu0
      %v499 = vadd.f32 %v299, %v498
      %v500 = vpop.f32.mrb[0].mxu0
      %v501 = vpop.f32.mrb[0].mxu0
      %v502 = vadd.f32 %v299, %v501
      %v503 = vpop.f32.mrb[0].mxu0
      %504 = vmatprep.mubr.bf16.mxu0 0
      %505 = vmatmul.mubr.bf16.gmra.mrb[0].mxu0 %v410
      %v506 = vpop.f32.mrb[0].mxu0
      %v507 = vadd.f32 %v299, %v506
      %v508 = vpop.f32.mrb[0].mxu0
      %v509 = vpop.f32.mrb[0].mxu0
      %v510 = vadd.f32 %v299, %v509
      %v511 = vpop.f32.mrb[0].mxu0
      %512 = vmatprep.mubr.bf16.mxu0 0
      %513 = vmatmul.mubr.bf16.gmra.mrb[0].mxu0 %v413
      %v514 = vpop.f32.mrb[0].mxu0
      %v515 = vadd.f32 %v299, %v514
      %v516 = vpop.f32.mrb[0].mxu0
      %v517 = vpop.f32.mrb[0].mxu0
      %v518 = vadd.f32 %v299, %v517
      %v519 = vpop.f32.mrb[0].mxu0
      %520 = vmatprep.mubr.bf16.mxu0 0
      %521 = vmatmul.mubr.bf16.gmra.mrb[0].mxu0 %v416
      %v522 = vpop.f32.mrb[0].mxu0
      %v523 = vadd.f32 %v299, %v522
      %v524 = vpop.f32.mrb[0].mxu0
      %v525 = vpop.f32.mrb[0].mxu0
      %v526 = vadd.f32 %v299, %v525
      %v527 = vpop.f32.mrb[0].mxu0
      %528 = vmatprep.mubr.bf16.mxu0 0
      %529 = vmatmul.mubr.bf16.gmra.mrb[0].mxu0 %v419
      %v530 = vpop.f32.mrb[0].mxu0
      %v531 = vadd.f32 %v299, %v530
      %v532 = vpop.f32.mrb[0].mxu0
      %v533 = vpop.f32.mrb[0].mxu0
      %v534 = vadd.f32 %v299, %v533
      %v535 = vpop.f32.mrb[0].mxu0
      %536 = vmatprep.mubr.bf16.mxu0 0
      %537 = vmatmul.mubr.bf16.gmra.mrb[0].mxu0 %v422
      %v538 = vpop.f32.mrb[0].mxu0
      %v539 = vadd.f32 %v299, %v538
      %v540 = vpop.f32.mrb[0].mxu0
      %v541 = vpop.f32.mrb[0].mxu0
      %v542 = vadd.f32 %v299, %v541
      %v543 = vpop.f32.mrb[0].mxu0
      %544 = vmatprep.mubr.bf16.mxu0 0
      %545 = vmatmul.mubr.bf16.gmra.mrb[0].mxu0 %v425
      %v546 = vpop.f32.mrb[0].mxu0
      %v547 = vadd.f32 %v299, %v546
      %v548 = vpop.f32.mrb[0].mxu0
      %v549 = vpop.f32.mrb[0].mxu0
      %v550 = vadd.f32 %v299, %v549
      %v551 = vpop.f32.mrb[0].mxu0
      %552 = vmatprep.mubr.bf16.mxu0 0
      %553 = vmatmul.mubr.bf16.gmra.mrb[0].mxu0 %v428
      %v554 = vpop.f32.mrb[0].mxu0
      %v555 = vadd.f32 %v299, %v554
      %v556 = vpop.f32.mrb[0].mxu0
      %v557 = vpop.f32.mrb[0].mxu0
      %v558 = vadd.f32 %v299, %v557
      %v559 = vpop.f32.mrb[0].mxu0
      %560 = vmatprep.mubr.bf16.mxu0 0
      %561 = vmatmul.mubr.bf16.gmra.mrb[0].mxu0 %v431
      %v562 = vpop.f32.mrb[0].mxu0
      %v563 = vadd.f32 %v299, %v562
      %v564 = vpop.f32.mrb[0].mxu0
      %v565 = vpop.f32.mrb[0].mxu0
      %v566 = vadd.f32 %v299, %v565
      %v567 = vpop.f32.mrb[0].mxu0
      %568 = vmatprep.mubr.bf16.mxu0 0
      %569 = vmatmul.mubr.bf16.gmra.mrb[0].mxu0 %v434
      %v570 = vpop.f32.mrb[0].mxu0
      %v571 = vadd.f32 %v299, %v570
      %v572 = vpop.f32.mrb[0].mxu0
      %v573 = vpop.f32.mrb[0].mxu0
      %v574 = vadd.f32 %v299, %v573
      %v575 = vpop.f32.mrb[0].mxu0
      %576 = vmatprep.mubr.bf16.mxu0 0
      %577 = vmatmul.mubr.bf16.gmra.mrb[0].mxu0 %v437
      %v578 = vpop.f32.mrb[0].mxu0
      %v579 = vadd.f32 %v299, %v578
      %v580 = vpop.f32.mrb[0].mxu0
      %v581 = vpop.f32.mrb[0].mxu0
      %v582 = vadd.f32 %v299, %v581
      %v583 = vpop.f32.mrb[0].mxu0
      %584 = vmatprep.mubr.bf16.mxu0 0
      %585 = vmatmul.mubr.bf16.gmra.mrb[0].mxu0 %v440
      %v586 = vpop.f32.mrb[0].mxu0
      %v587 = vadd.f32 %v299, %v586
      %v588 = vpop.f32.mrb[0].mxu0
      %v589 = vpop.f32.mrb[0].mxu0
      %v590 = vadd.f32 %v299, %v589
      %v591 = vpop.f32.mrb[0].mxu0
      %592 = vmatprep.mubr.bf16.mxu0 0
      %593 = vmatmul.mubr.bf16.gmra.mrb[0].mxu0 %v443
      %v594 = vpop.f32.mrb[0].mxu0
      %v595 = vadd.f32 %v299, %v594
      %v596 = vpop.f32.mrb[0].mxu0
      %v597 = vpop.f32.mrb[0].mxu0
      %v598 = vadd.f32 %v299, %v597
      %v599 = vpop.f32.mrb[0].mxu0
      %600 = vmatprep.mubr.bf16.mxu0 0
      %601 = vmatmul.mubr.bf16.gmra.mrb[0].mxu0 %v446
      %v602 = vpop.f32.mrb[0].mxu0
      %v603 = vadd.f32 %v299, %v602
      %v604 = vpop.f32.mrb[0].mxu0
      %v605 = vpop.f32.mrb[0].mxu0
      %v606 = vadd.f32 %v299, %v605
      %v607 = vpop.f32.mrb[0].mxu0
      %608 = vdwg.mxu0
      %v609 = vmax.f32 %v483, 0.0
      %v610 = vmax.f32 %v486, 0.0
      %v611 = vmax.f32 %v491, 0.0
      %v612 = vmax.f32 %v494, 0.0
      %v613 = vmax.f32 %v499, 0.0
      %v614 = vmax.f32 %v502, 0.0
      %v615 = vmax.f32 %v507, 0.0
      %v616 = vmax.f32 %v510, 0.0
      %v617 = vmax.f32 %v515, 0.0
      %v618 = vmax.f32 %v518, 0.0
      %v619 = vmax.f32 %v523, 0.0
      %v620 = vmax.f32 %v526, 0.0
      %v621 = vmax.f32 %v531, 0.0
      %v622 = vmax.f32 %v534, 0.0
      %v623 = vmax.f32 %v539, 0.0
      %v624 = vmax.f32 %v542, 0.0
      %v625 = vmax.f32 %v547, 0.0
      %v626 = vmax.f32 %v550, 0.0
      %v627 = vmax.f32 %v555, 0.0
      %v628 = vmax.f32 %v558, 0.0
      %v629 = vmax.f32 %v563, 0.0
      %v630 = vmax.f32 %v566, 0.0
      %v631 = vmax.f32 %v571, 0.0
      %v632 = vmax.f32 %v574, 0.0
      %v633 = vmax.f32 %v579, 0.0
      %v634 = vmax.f32 %v582, 0.0
      %v635 = vmax.f32 %v587, 0.0
      %v636 = vmax.f32 %v590, 0.0
      %v637 = vmax.f32 %v595, 0.0
      %v638 = vmax.f32 %v598, 0.0
      %v639 = vmax.f32 %v603, 0.0
      %v640 = vmax.f32 %v606, 0.0
      %v641 = vld [vmem:[#allocation2] sm:$0x1]
      %vm642 = vcmask 261120
      %v643 = vsel %vm642, %v609, 0.0
      %v644 = vsel %vm642, %v610, 0.0
      %v645 = vadd.f32 %v643, %v644
      %v646 = vsel %vm642, %v611, 0.0
      %v647 = vadd.f32 %v645, %v646
      %v648 = vsel %vm642, %v612, 0.0
      %v649 = vadd.f32 %v647, %v648
      %v650 = vsel %vm642, %v613, 0.0
      %v651 = vadd.f32 %v649, %v650
      %v652 = vsel %vm642, %v614, 0.0
      %v653 = vadd.f32 %v651, %v652
      %v654 = vsel %vm642, %v615, 0.0
      %v655 = vadd.f32 %v653, %v654
      %v656 = vsel %vm642, %v616, 0.0
      %v657 = vadd.f32 %v655, %v656
      %v658 = vsel %vm642, %v617, 0.0
      %v659 = vadd.f32 %v657, %v658
      %v660 = vsel %vm642, %v618, 0.0
      %v661 = vadd.f32 %v659, %v660
      %v662 = vsel %vm642, %v619, 0.0
      %v663 = vadd.f32 %v661, %v662
      %v664 = vsel %vm642, %v620, 0.0
      %v665 = vadd.f32 %v663, %v664
      %v666 = vsel %vm642, %v621, 0.0
      %v667 = vadd.f32 %v665, %v666
      %v668 = vsel %vm642, %v622, 0.0
      %v669 = vadd.f32 %v667, %v668
      %v670 = vsel %vm642, %v623, 0.0
      %v671 = vadd.f32 %v669, %v670
      %v672 = vsel %vm642, %v624, 0.0
      %v673 = vadd.f32 %v671, %v672
      %v674 = vsel %vm642, %v625, 0.0
      %v675 = vadd.f32 %v673, %v674
      %v676 = vsel %vm642, %v626, 0.0
      %v677 = vadd.f32 %v675, %v676
      %v678 = vsel %vm642, %v627, 0.0
      %v679 = vadd.f32 %v677, %v678
      %v680 = vsel %vm642, %v628, 0.0
      %v681 = vadd.f32 %v679, %v680
      %v682 = vsel %vm642, %v629, 0.0
      %v683 = vadd.f32 %v681, %v682
      %v684 = vsel %vm642, %v630, 0.0
      %v685 = vadd.f32 %v683, %v684
      %v686 = vsel %vm642, %v631, 0.0
      %v687 = vadd.f32 %v685, %v686
      %v688 = vsel %vm642, %v632, 0.0
      %v689 = vadd.f32 %v687, %v688
      %v690 = vsel %vm642, %v633, 0.0
      %v691 = vadd.f32 %v689, %v690
      %v692 = vsel %vm642, %v634, 0.0
      %v693 = vadd.f32 %v691, %v692
      %v694 = vsel %vm642, %v635, 0.0
      %v695 = vadd.f32 %v693, %v694
      %v696 = vsel %vm642, %v636, 0.0
      %v697 = vadd.f32 %v695, %v696
      %v698 = vsel %vm642, %v637, 0.0
      %v699 = vadd.f32 %v697, %v698
      %v700 = vsel %vm642, %v638, 0.0
      %v701 = vadd.f32 %v699, %v700
      %v702 = vsel %vm642, %v639, 0.0
      %v703 = vadd.f32 %v701, %v702
      %v704 = vsel %vm642, %v640, 0.0
      %v705 = vadd.f32 %v703, %v704
      %v706 = vrot.slane %v705, 4
      %v707 = vadd.f32 %v705, %v706
      %v708 = vrot.slane %v707, 2
      %v709 = vadd.f32 %v707, %v708
      %v710 = vrot.slane %v709, 1
      %v711 = vadd.f32 %v709, %v710
      %v712 = vadd.f32 %v641, %v711
      %vm713 = vcmask 253952
      %714 = vst.msk [vmem:[#allocation2] sm:$0x1] %vm713, %v712
      // Predicated region
      $region45: #{diffusion_loc_model_bev_forward.2} parent=39 // pred_check
        %p715 = pneg %p250
      $region46: #{diffusion_loc_model_bev_forward.2} parent=39 // pred_check_branch
        %717 = sbr.rel (%p715) target = $region48
      $region47: #{diffusion_loc_model_bev_forward.2} parent=39 // pred_region
        %v718 = vld [vmem:[#allocation2] sm:$0x1]
        %v719 = vmul.f32 %v718, 0.00390625
        %v720 = vld [vmem:[%s3] sm:$0xff]
        %v721 = vld [vmem:[%s3 + $0x8] sm:$0xff]
        %v722 = vld [vmem:[%s3 + $0x10] sm:$0xff]
        %v723 = vld [vmem:[%s3 + $0x18] sm:$0xff]
        %v724 = vld [vmem:[%s4] sm:$0x1]
        %v726 = vsel %vm642, %v719, 0
        %728 = vmatprep.subr.mxu0 0.0
        %729 = vmatpush1.msra.mxu0 %v720
        %730 = vmatprep.subr.mxu0 0.0
        %731 = vmatpush1.msra.mxu0 %v721
        %732 = vmatprep.subr.mxu0 0.0
        %733 = vmatpush1.msra.mxu0 %v722
        %734 = vmatprep.subr.mxu0 0.0
        %735 = vmatpush1.msra.mxu0 %v723
        %736 = vmatprep.subr.mxu0 0.0
        %737 = vmatpush1.msra.mxu0 0.0
        %738 = vmatprep.subr.mxu0 0.0
        %739 = vmatpush1.msra.mxu0 0.0
        %740 = vmatprep.subr.mxu0 0.0
        %741 = vmatpush1.msra.mxu0 0.0
        %742 = vmatprep.subr.mxu0 0.0
        %743 = vmatpush1.msra.mxu0 0.0
        %744 = vmatprep.subr.mxu0 0.0
        %745 = vmatpush1.msra.mxu0 0.0
        %746 = vmatprep.subr.mxu0 0.0
        %747 = vmatpush1.msra.mxu0 0.0
        %748 = vmatprep.subr.mxu0 0.0
        %749 = vmatpush1.msra.mxu0 0.0
        %750 = vmatprep.subr.mxu0 0.0
        %751 = vmatpush1.msra.mxu0 0.0
        %752 = vmatprep.subr.mxu0 0.0
        %753 = vmatpush1.msra.mxu0 0.0
        %754 = vmatprep.subr.mxu0 0.0
        %755 = vmatpush1.msra.mxu0 0.0
        %756 = vmatprep.subr.mxu0 0.0
        %757 = vmatpush1.msra.mxu0 0.0
        %758 = vmatprep.subr.mxu0 0.0
        %759 = vmatpush1.msra.mxu0 0.0
        %760 = vmatprep.subr.mxu0 0.0
        %761 = vmatpush1.msra.mxu0 0.0
        %762 = vmatprep.subr.mxu0 0.0
        %763 = vmatpush1.msra.mxu0 0.0
        %764 = vmatprep.subr.mxu0 0.0
        %765 = vmatpush1.msra.mxu0 0.0
        %766 = vmatprep.subr.mxu0 0.0
        %767 = vmatpush1.msra.mxu0 0.0
        %768 = vmatprep.subr.mxu0 0.0
        %769 = vmatpush1.msra.mxu0 0.0
        %770 = vmatprep.subr.mxu0 0.0
        %771 = vmatpush1.msra.mxu0 0.0
        %772 = vmatprep.subr.mxu0 0.0
        %773 = vmatpush1.msra.mxu0 0.0
        %774 = vmatprep.subr.mxu0 0.0
        %775 = vmatpush1.msra.mxu0 0.0
        %776 = vmatprep.subr.mxu0 0.0
        %777 = vmatpush1.msra.mxu0 0.0
        %778 = vmatprep.subr.mxu0 0.0
        %779 = vmatpush1.msra.mxu0 0.0
        %780 = vmatprep.subr.mxu0 0.0
        %781 = vmatpush1.msra.mxu0 0.0
        %782 = vmatprep.subr.mxu0 0.0
        %783 = vmatpush1.msra.mxu0 0.0
        %784 = vmatprep.subr.mxu0 0.0
        %785 = vmatpush1.msra.mxu0 0.0
        %786 = vmatprep.subr.mxu0 0.0
        %787 = vmatpush1.msra.mxu0 0.0
        %788 = vmatprep.subr.mxu0 0.0
        %789 = vmatpush1.msra.mxu0 0.0
        %790 = vmatprep.subr.mxu0 0.0
        %791 = vmatpush1.msra.mxu0 0.0
        %792 = vmatprep.mubr.f32.mxu0 0.0
        %793 = vmatmul.mubr.f32.gmra.mrb[0].mxu0 %v726
        %v794 = vpop.f32.mrb[0].mxu0
        %v795 = vadd.f32 %v724, %v794
        %v796 = vpop.f32.mrb[0].mxu0
        %797 = vdwg.mxu0
        %vm798 = vcmask 516096
        %799 = vst.msk [vmem:[%s248] sm:$0x1] %vm798, %v795
      $region48: #{diffusion_loc_model_bev_forward.2} parent=39 // pred_fallthru
        _
      %p800 = scmp.lt.s32.totalorder %s20, 7
      %s801 = scalar_select %p800, %s20, 7
      %s802 = scalar_lea.vmem %s5, %s801
      // Predicated region
      $region49: #{diffusion_loc_model_bev_forward.2} parent=39 // pred_check
        %p803 = pneg %p158
      $region50: #{diffusion_loc_model_bev_forward.2} parent=39 // pred_check_branch
        %805 = sbr.rel (%p803) target = $region52
      $region51: #{diffusion_loc_model_bev_forward.2} parent=39 // pred_region
        _
      $region52: #{diffusion_loc_model_bev_forward.2} parent=39 // pred_fallthru
        _
    $region40: #{diffusion_loc_model_bev_forward.2} parent=5 // pred_fallthru
      _
    %p806 = scmp.le.s32.totalorder 2, %s11
    // Predicated region
    $region53: #{diffusion_loc_model_bev_forward.2} parent=5 // pred_check
      %p807 = pneg %p806
    $region54: #{diffusion_loc_model_bev_forward.2} parent=5 // pred_check_branch
      %809 = sbr.rel (%p807) target = $region56
    $region55: #{diffusion_loc_model_bev_forward.2} parent=5 // pred_region
      %s810 = ssub.s32 %s11, 2
      // Predicated region
      $region57: #{diffusion_loc_model_bev_forward.2} parent=55 // pred_check
        %p811 = pneg %p164
      $region58: #{diffusion_loc_model_bev_forward.2} parent=55 // pred_check_branch
        %813 = sbr.rel (%p811) target = $region60
      $region59: #{diffusion_loc_model_bev_forward.2} parent=55 // pred_region
        %p814 = scmp.lt.s32.totalorder %s22, 7
        %s815 = scalar_select %p814, %s22, 7
        %s816 = scalar_lea.vmem %s5, %s815
      $region60: #{diffusion_loc_model_bev_forward.2} parent=55 // pred_fallthru
        _
    $region56: #{diffusion_loc_model_bev_forward.2} parent=5 // pred_fallthru
      _
  $region6: #{diffusion_loc_model_bev_forward.2} parent=0 // loop_footer
    %s15 = sadd.s32 1, %s11
  $region7: #{diffusion_loc_model_bev_forward.2} parent=0 // loop_footer_branch
    %10 = sbr.rel target = $region3
  $region8: #{diffusion_loc_model_bev_forward.2} parent=0 // loop_exit
    _

</llo_original>
